<compile_context>
chip_gen: v5e
topology: v5e:2x2
jax: 0.10.0
libtpu: 0.0.40
codegen_flags: <defaults>
</compile_context>

<pallas_src>
import functools

import jax
import jax.numpy as jnp
from jax.experimental import pallas as pl
from jax.experimental.pallas import tpu as pltpu

_MIB = 1024 * 1024


def _round_up(v, m):
    return ((v + m - 1) // m) * m


def _pad2(a, rows, cols):
    return jnp.pad(a, ((0, rows - a.shape[0]), (0, cols - a.shape[1])))


def _vmem_capacity_bytes():
    try:
        return int(pltpu.get_tpu_info().vmem_capacity_bytes)
    except Exception:
        return 128 * _MIB


def _geometry(n):
    """(n_pad, row tile TM, reduction tile TK, scoped VMEM limit bytes)."""
    vmem_cap = _vmem_capacity_bytes()
    if n <= 256:
        n_pad = _round_up(n, 128)
        return n_pad, n_pad, n_pad, 32 * _MIB           # single tile for tiny graphs
    if vmem_cap > 96 * _MIB:                            # v5e / v6e: 128 MiB VMEM
        tm, tk, limit = 512, 1024, 96 * _MIB
    else:                                               # v7x: 64 MiB VMEM per TensorCore
        tm, tk, limit = 512, 512, 48 * _MIB
    n_pad = _round_up(n, max(tm, tk))
    return n_pad, min(tm, n_pad), min(tk, n_pad), limit


def _sage_layer_kernel(*refs, activation, valid_out, project_first):
    if project_first:
        (adj_ref, agg_ref, xm_ref, invdeg_ref, wself_ref, b_ref,
         o_ref, acc_ref) = refs
        wneigh_ref = None
    else:
        (adj_ref, agg_ref, xm_ref, invdeg_ref, wself_ref, wneigh_ref, b_ref,
         o_ref, acc_ref) = refs

    k = pl.program_id(1)

    @pl.when(k == 0)
    def _():
        acc_ref[...] = jnp.zeros_like(acc_ref)

    # int8 {0,1} adjacency tile widened to bf16 (exact) on otherwise-idle VPU slots.
    a_blk = adj_ref[...].astype(jnp.bfloat16)                        # (TM, TK)
    acc_ref[...] += jnp.dot(a_blk, agg_ref[...],                     # (TK, acc_w) bf16
                            preferred_element_type=jnp.float32)

    @pl.when(k == pl.num_programs(1) - 1)
    def _():
        neigh = invdeg_ref[...] * acc_ref[...]                       # mean over in-neighbors
        if not project_first:
            neigh = jnp.dot(neigh.astype(jnp.bfloat16), wneigh_ref[...],
                            preferred_element_type=jnp.float32)
        out = (jnp.dot(xm_ref[...], wself_ref[...],
                       preferred_element_type=jnp.float32)
               + neigh + b_ref[...])
        if activation == "relu":
            out = jnp.maximum(out, 0.0)
        else:   # log_softmax over classes; mask lane-padding columns to -inf first
            col = jax.lax.broadcasted_iota(jnp.int32, out.shape, 1)
            out = jnp.where(col < valid_out, out, -jnp.inf)
            m = jnp.max(out, axis=1, keepdims=True)
            s = out - m
            lse = jnp.log(jnp.sum(jnp.exp(s), axis=1, keepdims=True))
            out = s - lse
        o_ref[...] = out.astype(o_ref.dtype)


def sage_layer(adj_i8, x_bf16, inv_deg, w_self, w_neigh, b, *, activation,
               valid_out, tm, tk, vmem_limit, out_dtype):
    n_pad = adj_i8.shape[0]
    f_in_p = x_bf16.shape[1]
    f_out_p = w_self.shape[1]
    project_first = f_out_p < f_in_p

    if project_first:
        # Hoist the projection out of the k loop: P = X @ W_neigh computed ONCE by XLA and
        # streamed in bf16 -- narrower than X and never recomputed per row tile.
        agg = jnp.dot(x_bf16, w_neigh,
                      preferred_element_type=jnp.float32).astype(jnp.bfloat16)
    else:
        agg = x_bf16
    agg_w = agg.shape[1]

    const = dict(pipeline_mode=pl.Buffered(1))   # single-buffer grid-invariant operands

    in_specs = [
        pl.BlockSpec((tm, tk), lambda i, k: (i, k)),                 # adjacency tile (int8)
        pl.BlockSpec((tk, agg_w), lambda i, k: (k, 0)),              # aggregation operand (bf16)
        pl.BlockSpec((tm, f_in_p), lambda i, k: (i, 0)),             # x rows for self term (bf16)
        pl.BlockSpec((tm, 1), lambda i, k: (i, 0)),                  # 1 / in-degree (f32)
        pl.BlockSpec((f_in_p, f_out_p), lambda i, k: (0, 0), **const),   # W_self (bf16)
    ]
    args = [adj_i8, agg, x_bf16, inv_deg, w_self]
    if not project_first:
        in_specs.append(pl.BlockSpec((f_in_p, f_out_p), lambda i, k: (0, 0), **const))
        args.append(w_neigh)                                         # W_neigh (bf16)
    in_specs.append(pl.BlockSpec((1, f_out_p), lambda i, k: (0, 0), **const))   # bias (f32)
    args.append(b)

    kernel = functools.partial(_sage_layer_kernel, activation=activation,
                               valid_out=valid_out, project_first=project_first)
    return pl.pallas_call(
        kernel,
        out_shape=jax.ShapeDtypeStruct((n_pad, f_out_p), out_dtype),
        grid_spec=pltpu.PrefetchScalarGridSpec(
            num_scalar_prefetch=0,
            grid=(n_pad // tm, n_pad // tk),
            in_specs=in_specs,
            out_specs=pl.BlockSpec((tm, f_out_p), lambda i, k: (i, 0)),
            scratch_shapes=[pltpu.VMEM((tm, agg_w), jnp.float32)],
        ),
        compiler_params=pltpu.CompilerParams(
            dimension_semantics=("parallel", "arbitrary"),
            vmem_limit_bytes=vmem_limit),
    )(*args)


def graphsage_forward(adj, x, params):
    n = adj.shape[0]
    in_ch = x.shape[1]
    hidden = params["w_self1"].shape[1]
    out_ch = params["w_self2"].shape[1]

    n_pad, tm, tk, vmem_limit = _geometry(n)
    f_in_p = _round_up(in_ch, 128)
    f_hid_p = _round_up(hidden, 128)
    f_out_p = _round_up(out_ch, 128)

    # Keep A as raw 0/1 int8 (exact) and pass 1/deg separately; scaling happens at finalize.
    # TODO(synk): on v7x evaluate fp8(e4m3) adjacency storage feeding the MXU directly.
    deg = jnp.sum(adj, axis=1, keepdims=True)
    inv_deg = 1.0 / jnp.maximum(deg, 1.0)

    adj_i8 = _pad2(adj, n_pad, n_pad).astype(jnp.int8)
    inv_deg_p = _pad2(inv_deg, n_pad, 1).astype(jnp.float32)
    x_p = _pad2(x, n_pad, f_in_p).astype(jnp.bfloat16)

    w_self1 = _pad2(params["w_self1"], f_in_p, f_hid_p).astype(jnp.bfloat16)
    w_neigh1 = _pad2(params["w_neigh1"], f_in_p, f_hid_p).astype(jnp.bfloat16)
    b1 = _pad2(params["b1"], 1, f_hid_p).astype(jnp.float32)
    w_self2 = _pad2(params["w_self2"], f_hid_p, f_out_p).astype(jnp.bfloat16)
    w_neigh2 = _pad2(params["w_neigh2"], f_hid_p, f_out_p).astype(jnp.bfloat16)
    b2 = _pad2(params["b2"], 1, f_out_p).astype(jnp.float32)

    h = sage_layer(adj_i8, x_p, inv_deg_p, w_self1, w_neigh1, b1,
                   activation="relu", valid_out=hidden, tm=tm, tk=tk,
                   vmem_limit=vmem_limit, out_dtype=jnp.bfloat16)
    out_p = sage_layer(adj_i8, h, inv_deg_p, w_self2, w_neigh2, b2,
                       activation="log_softmax", valid_out=out_ch, tm=tm, tk=tk,
                       vmem_limit=vmem_limit, out_dtype=jnp.float32)
    return out_p[:n, :out_ch]


def init_params(key, in_channels, hidden_channels, out_channels):
    ks = jax.random.split(key, 4)
    scale1 = 1.0 / jnp.sqrt(in_channels)
    scale2 = 1.0 / jnp.sqrt(hidden_channels)
    return {
        "w_self1": jax.random.uniform(ks[0], (in_channels, hidden_channels),
                                      jnp.float32, -scale1, scale1),
        "w_neigh1": jax.random.uniform(ks[1], (in_channels, hidden_channels),
                                       jnp.float32, -scale1, scale1),
        "b1": jnp.zeros((1, hidden_channels), jnp.float32),
        "w_self2": jax.random.uniform(ks[2], (hidden_channels, out_channels),
                                      jnp.float32, -scale2, scale2),
        "w_neigh2": jax.random.uniform(ks[3], (hidden_channels, out_channels),
                                       jnp.float32, -scale2, scale2),
        "b2": jnp.zeros((1, out_channels), jnp.float32),
    }


def graphsage_reference(adj, x, params):
    # Pure-JAX reference (f32) for a tolerance check.
    deg = jnp.sum(adj, axis=1, keepdims=True)
    agg = lambda h: (adj @ h) / jnp.maximum(deg, 1.0)
    h = x @ params["w_self1"] + agg(x) @ params["w_neigh1"] + params["b1"]
    h = jnp.maximum(h, 0.0)
    o = h @ params["w_self2"] + agg(h) @ params["w_neigh2"] + params["b2"]
    return jax.nn.log_softmax(o, axis=1)


if __name__ == "__main__":
    N = 8               # number of graph nodes
    IN_CH = 4
    HIDDEN_CH = 32
    OUT_CH = 8          # number of classes

    key = jax.random.PRNGKey(0)
    k_adj, k_x, k_p = jax.random.split(key, 3)

    # Deterministic random directed graph (dense adjacency, no self loops).
    adj = (jax.random.uniform(k_adj, (N, N)) < 0.4).astype(jnp.float32)
    adj = adj * (1.0 - jnp.eye(N, dtype=jnp.float32))
    x = jax.random.normal(k_x, (N, IN_CH), jnp.float32)

    params = init_params(k_p, IN_CH, HIDDEN_CH, OUT_CH)

    out = jax.jit(graphsage_forward)(adj, x, params)
    out = jax.block_until_ready(out)

    assert out.shape == (N, OUT_CH)
    # log_softmax rows must sum to ~1 after exp
    assert jnp.allclose(jnp.sum(jnp.exp(out), axis=1), 1.0, atol=1e-4)
    # match the pure-JAX f32 reference (loose tol for the bf16 streaming path)
    ref = graphsage_reference(adj, x, params)
    assert jnp.allclose(out, ref, atol=0.15), float(jnp.max(jnp.abs(out - ref)))
    print("KERNEL_OK")
</pallas_src>

<mosaic_0001>
module attributes {stable_mosaic.version = 11 : i64} {
  func.func @_sage_layer_kernel(%arg0: i32, %arg1: i32, %arg2: memref<128x128xi8, #tpu.memory_space<vmem>>, %arg3: memref<128x128xbf16, #tpu.memory_space<vmem>>, %arg4: memref<128x128xbf16, #tpu.memory_space<vmem>>, %arg5: memref<128x1xf32, #tpu.memory_space<vmem>>, %arg6: memref<128x128xbf16, #tpu.memory_space<vmem>>, %arg7: memref<128x128xbf16, #tpu.memory_space<vmem>>, %arg8: memref<1x128xf32, #tpu.memory_space<vmem>>, %arg9: memref<128x128xbf16, #tpu.memory_space<vmem>>, %arg10: memref<128x128xf32, #tpu.memory_space<vmem>>) attributes {dimension_semantics = [#tpu.dimension_semantics<parallel>, #tpu.dimension_semantics<arbitrary>], iteration_bounds = array<i64: 1, 1>, scalar_prefetch = 0 : i64, scratch_operands = 1 : i64, tpu.core_type = #tpu.core_type<tc>, window_params = [{transform_indices = @transform_0, window_bounds = array<i64: 128, 128>}, {transform_indices = @transform_1, window_bounds = array<i64: 128, 128>}, {transform_indices = @transform_2, window_bounds = array<i64: 128, 128>}, {transform_indices = @transform_3, window_bounds = array<i64: 128, 1>}, {pipeline_mode = #tpu.pipeline_mode<synchronous>, transform_indices = @transform_4, window_bounds = array<i64: 128, 128>}, {pipeline_mode = #tpu.pipeline_mode<synchronous>, transform_indices = @transform_5, window_bounds = array<i64: 128, 128>}, {pipeline_mode = #tpu.pipeline_mode<synchronous>, transform_indices = @transform_6, window_bounds = array<i64: 1, 128>}, {transform_indices = @transform_7, window_bounds = array<i64: 128, 128>}]} {
    %c0_i32 = arith.constant 0 : i32
    %0 = arith.cmpi eq, %arg1, %c0_i32 : i32
    %1 = arith.extui %0 : i1 to i32
    %c0_i32_0 = arith.constant 0 : i32
    %2 = arith.cmpi ne, %1, %c0_i32_0 : i32
    scf.if %2 {
      %cst_10 = arith.constant 0.000000e+00 : f32
      %13 = vector.broadcast %cst_10 : f32 to vector<128x128xf32>
      %c0_11 = arith.constant 0 : index
      %c0_12 = arith.constant 0 : index
      %14 = vector.load %arg10[%c0_11, %c0_12] : memref<128x128xf32, #tpu.memory_space<vmem>>, vector<128x128xf32>
      tpu.vector_store %arg10[%c0_11, %c0_12], %13 {strides = array<i32>} : memref<128x128xf32, #tpu.memory_space<vmem>>, vector<128x128xf32>,
    } else {
    }
    %c0 = arith.constant 0 : index
    %c0_1 = arith.constant 0 : index
    %3 = vector.load %arg2[%c0, %c0_1] : memref<128x128xi8, #tpu.memory_space<vmem>>, vector<128x128xi8>
    %4 = arith.sitofp %3 : vector<128x128xi8> to vector<128x128xbf16>
    %c0_2 = arith.constant 0 : index
    %c0_3 = arith.constant 0 : index
    %5 = vector.load %arg10[%c0_2, %c0_3] : memref<128x128xf32, #tpu.memory_space<vmem>>, vector<128x128xf32>
    %c0_4 = arith.constant 0 : index
    %c0_5 = arith.constant 0 : index
    %6 = vector.load %arg3[%c0_4, %c0_5] : memref<128x128xbf16, #tpu.memory_space<vmem>>, vector<128x128xbf16>
    %cst = arith.constant dense<0.000000e+00> : vector<128x128xf32>
    %7 = tpu.matmul %4, %6, %cst {dimension_numbers = #tpu.dot_dimension_numbers<[1], [0], [0], [1], [0, 0, 1, 1], [], []>} : vector<128x128xbf16>, vector<128x128xbf16>, vector<128x128xf32> -> vector<128x128xf32>
    %8 = arith.addf %5, %7 : vector<128x128xf32>
    %c0_6 = arith.constant 0 : index
    %c0_7 = arith.constant 0 : index
    %9 = vector.load %arg10[%c0_6, %c0_7] : memref<128x128xf32, #tpu.memory_space<vmem>>, vector<128x128xf32>
    tpu.vector_store %arg10[%c0_6, %c0_7], %8 {strides = array<i32>} : memref<128x128xf32, #tpu.memory_space<vmem>>, vector<128x128xf32>,
    %c0_i32_8 = arith.constant 0 : i32
    %10 = arith.cmpi eq, %arg1, %c0_i32_8 : i32
    %11 = arith.extui %10 : i1 to i32
    %c0_i32_9 = arith.constant 0 : i32
    %12 = arith.cmpi ne, %11, %c0_i32_9 : i32
    scf.if %12 {
      %c0_10 = arith.constant 0 : index
      %c0_11 = arith.constant 0 : index
      %13 = vector.load %arg5[%c0_10, %c0_11] : memref<128x1xf32, #tpu.memory_space<vmem>>, vector<128x1xf32>
      %c0_12 = arith.constant 0 : index
      %c0_13 = arith.constant 0 : index
      %14 = vector.load %arg10[%c0_12, %c0_13] : memref<128x128xf32, #tpu.memory_space<vmem>>, vector<128x128xf32>
      %15 = vector.broadcast %13 : vector<128x1xf32> to vector<128x128xf32>
      %16 = arith.mulf %15, %14 : vector<128x128xf32>
      %17 = arith.truncf %16 : vector<128x128xf32> to vector<128x128xbf16>
      %c0_14 = arith.constant 0 : index
      %c0_15 = arith.constant 0 : index
      %18 = vector.load %arg7[%c0_14, %c0_15] : memref<128x128xbf16, #tpu.memory_space<vmem>>, vector<128x128xbf16>
      %cst_16 = arith.constant dense<0.000000e+00> : vector<128x128xf32>
      %19 = tpu.matmul %17, %18, %cst_16 {dimension_numbers = #tpu.dot_dimension_numbers<[1], [0], [0], [1], [0, 0, 1, 1], [], []>} : vector<128x128xbf16>, vector<128x128xbf16>, vector<128x128xf32> -> vector<128x128xf32>
      %c0_17 = arith.constant 0 : index
      %c0_18 = arith.constant 0 : index
      %20 = vector.load %arg4[%c0_17, %c0_18] : memref<128x128xbf16, #tpu.memory_space<vmem>>, vector<128x128xbf16>
      %c0_19 = arith.constant 0 : index
      %c0_20 = arith.constant 0 : index
      %21 = vector.load %arg6[%c0_19, %c0_20] : memref<128x128xbf16, #tpu.memory_space<vmem>>, vector<128x128xbf16>
      %cst_21 = arith.constant dense<0.000000e+00> : vector<128x128xf32>
      %22 = tpu.matmul %20, %21, %cst_21 {dimension_numbers = #tpu.dot_dimension_numbers<[1], [0], [0], [1], [0, 0, 1, 1], [], []>} : vector<128x128xbf16>, vector<128x128xbf16>, vector<128x128xf32> -> vector<128x128xf32>
      %23 = arith.addf %22, %19 : vector<128x128xf32>
      %c0_22 = arith.constant 0 : index
      %c0_23 = arith.constant 0 : index
      %24 = vector.load %arg8[%c0_22, %c0_23] : memref<1x128xf32, #tpu.memory_space<vmem>>, vector<1x128xf32>
      %25 = vector.broadcast %24 : vector<1x128xf32> to vector<128x128xf32>
      %26 = arith.addf %23, %25 : vector<128x128xf32>
      %cst_24 = arith.constant 0.000000e+00 : f32
      %27 = vector.broadcast %cst_24 : f32 to vector<128x128xf32>
      %28 = arith.maximumf %26, %27 : vector<128x128xf32>
      %29 = arith.truncf %28 : vector<128x128xf32> to vector<128x128xbf16>
      %c0_25 = arith.constant 0 : index
      %c0_26 = arith.constant 0 : index
      %30 = vector.load %arg9[%c0_25, %c0_26] : memref<128x128xbf16, #tpu.memory_space<vmem>>, vector<128x128xbf16>
      tpu.vector_store %arg9[%c0_25, %c0_26], %29 {strides = array<i32>} : memref<128x128xbf16, #tpu.memory_space<vmem>>, vector<128x128xbf16>,
    } else {
    }
    return
  }
  func.func @transform_0(%arg0: i32, %arg1: i32) -> (i32, i32) {
    %c0_i32 = arith.constant 0 : i32
    return %arg0, %arg1 : i32, i32
  }
  func.func @transform_1(%arg0: i32, %arg1: i32) -> (i32, i32) {
    %c0_i32 = arith.constant 0 : i32
    %c0_i32_0 = arith.constant 0 : i32
    return %arg1, %c0_i32 : i32, i32
  }
  func.func @transform_2(%arg0: i32, %arg1: i32) -> (i32, i32) {
    %c0_i32 = arith.constant 0 : i32
    %c0_i32_0 = arith.constant 0 : i32
    return %arg0, %c0_i32 : i32, i32
  }
  func.func @transform_3(%arg0: i32, %arg1: i32) -> (i32, i32) {
    %c0_i32 = arith.constant 0 : i32
    %c0_i32_0 = arith.constant 0 : i32
    return %arg0, %c0_i32 : i32, i32
  }
  func.func @transform_4(%arg0: i32, %arg1: i32) -> (i32, i32) {
    %c0_i32 = arith.constant 0 : i32
    %c0_i32_0 = arith.constant 0 : i32
    %c0_i32_1 = arith.constant 0 : i32
    return %c0_i32, %c0_i32_0 : i32, i32
  }
  func.func @transform_5(%arg0: i32, %arg1: i32) -> (i32, i32) {
    %c0_i32 = arith.constant 0 : i32
    %c0_i32_0 = arith.constant 0 : i32
    %c0_i32_1 = arith.constant 0 : i32
    return %c0_i32, %c0_i32_0 : i32, i32
  }
  func.func @transform_6(%arg0: i32, %arg1: i32) -> (i32, i32) {
    %c0_i32 = arith.constant 0 : i32
    %c0_i32_0 = arith.constant 0 : i32
    %c0_i32_1 = arith.constant 0 : i32
    return %c0_i32, %c0_i32_0 : i32, i32
  }
  func.func @transform_7(%arg0: i32, %arg1: i32) -> (i32, i32) {
    %c0_i32 = arith.constant 0 : i32
    %c0_i32_0 = arith.constant 0 : i32
    return %arg0, %c0_i32 : i32, i32
  }
}

module attributes {stable_mosaic.version = 11 : i64} {
  func.func @_sage_layer_kernel(%arg0: i32, %arg1: i32, %arg2: memref<128x128xi8, #tpu.memory_space<vmem>>, %arg3: memref<128x128xbf16, #tpu.memory_space<vmem>>, %arg4: memref<128x128xbf16, #tpu.memory_space<vmem>>, %arg5: memref<128x1xf32, #tpu.memory_space<vmem>>, %arg6: memref<128x128xbf16, #tpu.memory_space<vmem>>, %arg7: memref<128x128xbf16, #tpu.memory_space<vmem>>, %arg8: memref<1x128xf32, #tpu.memory_space<vmem>>, %arg9: memref<128x128xf32, #tpu.memory_space<vmem>>, %arg10: memref<128x128xf32, #tpu.memory_space<vmem>>) attributes {dimension_semantics = [#tpu.dimension_semantics<parallel>, #tpu.dimension_semantics<arbitrary>], iteration_bounds = array<i64: 1, 1>, scalar_prefetch = 0 : i64, scratch_operands = 1 : i64, tpu.core_type = #tpu.core_type<tc>, window_params = [{transform_indices = @transform_0, window_bounds = array<i64: 128, 128>}, {transform_indices = @transform_1, window_bounds = array<i64: 128, 128>}, {transform_indices = @transform_2, window_bounds = array<i64: 128, 128>}, {transform_indices = @transform_3, window_bounds = array<i64: 128, 1>}, {pipeline_mode = #tpu.pipeline_mode<synchronous>, transform_indices = @transform_4, window_bounds = array<i64: 128, 128>}, {pipeline_mode = #tpu.pipeline_mode<synchronous>, transform_indices = @transform_5, window_bounds = array<i64: 128, 128>}, {pipeline_mode = #tpu.pipeline_mode<synchronous>, transform_indices = @transform_6, window_bounds = array<i64: 1, 128>}, {transform_indices = @transform_7, window_bounds = array<i64: 128, 128>}]} {
    %c0_i32 = arith.constant 0 : i32
    %0 = arith.cmpi eq, %arg1, %c0_i32 : i32
    %1 = arith.extui %0 : i1 to i32
    %c0_i32_0 = arith.constant 0 : i32
    %2 = arith.cmpi ne, %1, %c0_i32_0 : i32
    scf.if %2 {
      %cst_10 = arith.constant 0.000000e+00 : f32
      %13 = vector.broadcast %cst_10 : f32 to vector<128x128xf32>
      %c0_11 = arith.constant 0 : index
      %c0_12 = arith.constant 0 : index
      %14 = vector.load %arg10[%c0_11, %c0_12] : memref<128x128xf32, #tpu.memory_space<vmem>>, vector<128x128xf32>
      tpu.vector_store %arg10[%c0_11, %c0_12], %13 {strides = array<i32>} : memref<128x128xf32, #tpu.memory_space<vmem>>, vector<128x128xf32>,
    } else {
    }
    %c0 = arith.constant 0 : index
    %c0_1 = arith.constant 0 : index
    %3 = vector.load %arg2[%c0, %c0_1] : memref<128x128xi8, #tpu.memory_space<vmem>>, vector<128x128xi8>
    %4 = arith.sitofp %3 : vector<128x128xi8> to vector<128x128xbf16>
    %c0_2 = arith.constant 0 : index
    %c0_3 = arith.constant 0 : index
    %5 = vector.load %arg10[%c0_2, %c0_3] : memref<128x128xf32, #tpu.memory_space<vmem>>, vector<128x128xf32>
    %c0_4 = arith.constant 0 : index
    %c0_5 = arith.constant 0 : index
    %6 = vector.load %arg3[%c0_4, %c0_5] : memref<128x128xbf16, #tpu.memory_space<vmem>>, vector<128x128xbf16>
    %cst = arith.constant dense<0.000000e+00> : vector<128x128xf32>
    %7 = tpu.matmul %4, %6, %cst {dimension_numbers = #tpu.dot_dimension_numbers<[1], [0], [0], [1], [0, 0, 1, 1], [], []>} : vector<128x128xbf16>, vector<128x128xbf16>, vector<128x128xf32> -> vector<128x128xf32>
    %8 = arith.addf %5, %7 : vector<128x128xf32>
    %c0_6 = arith.constant 0 : index
    %c0_7 = arith.constant 0 : index
    %9 = vector.load %arg10[%c0_6, %c0_7] : memref<128x128xf32, #tpu.memory_space<vmem>>, vector<128x128xf32>
    tpu.vector_store %arg10[%c0_6, %c0_7], %8 {strides = array<i32>} : memref<128x128xf32, #tpu.memory_space<vmem>>, vector<128x128xf32>,
    %c0_i32_8 = arith.constant 0 : i32
    %10 = arith.cmpi eq, %arg1, %c0_i32_8 : i32
    %11 = arith.extui %10 : i1 to i32
    %c0_i32_9 = arith.constant 0 : i32
    %12 = arith.cmpi ne, %11, %c0_i32_9 : i32
    scf.if %12 {
      %c0_10 = arith.constant 0 : index
      %c0_11 = arith.constant 0 : index
      %13 = vector.load %arg5[%c0_10, %c0_11] : memref<128x1xf32, #tpu.memory_space<vmem>>, vector<128x1xf32>
      %c0_12 = arith.constant 0 : index
      %c0_13 = arith.constant 0 : index
      %14 = vector.load %arg10[%c0_12, %c0_13] : memref<128x128xf32, #tpu.memory_space<vmem>>, vector<128x128xf32>
      %15 = vector.broadcast %13 : vector<128x1xf32> to vector<128x128xf32>
      %16 = arith.mulf %15, %14 : vector<128x128xf32>
      %17 = arith.truncf %16 : vector<128x128xf32> to vector<128x128xbf16>
      %c0_14 = arith.constant 0 : index
      %c0_15 = arith.constant 0 : index
      %18 = vector.load %arg7[%c0_14, %c0_15] : memref<128x128xbf16, #tpu.memory_space<vmem>>, vector<128x128xbf16>
      %cst_16 = arith.constant dense<0.000000e+00> : vector<128x128xf32>
      %19 = tpu.matmul %17, %18, %cst_16 {dimension_numbers = #tpu.dot_dimension_numbers<[1], [0], [0], [1], [0, 0, 1, 1], [], []>} : vector<128x128xbf16>, vector<128x128xbf16>, vector<128x128xf32> -> vector<128x128xf32>
      %c0_17 = arith.constant 0 : index
      %c0_18 = arith.constant 0 : index
      %20 = vector.load %arg4[%c0_17, %c0_18] : memref<128x128xbf16, #tpu.memory_space<vmem>>, vector<128x128xbf16>
      %c0_19 = arith.constant 0 : index
      %c0_20 = arith.constant 0 : index
      %21 = vector.load %arg6[%c0_19, %c0_20] : memref<128x128xbf16, #tpu.memory_space<vmem>>, vector<128x128xbf16>
      %cst_21 = arith.constant dense<0.000000e+00> : vector<128x128xf32>
      %22 = tpu.matmul %20, %21, %cst_21 {dimension_numbers = #tpu.dot_dimension_numbers<[1], [0], [0], [1], [0, 0, 1, 1], [], []>} : vector<128x128xbf16>, vector<128x128xbf16>, vector<128x128xf32> -> vector<128x128xf32>
      %23 = arith.addf %22, %19 : vector<128x128xf32>
      %c0_22 = arith.constant 0 : index
      %c0_23 = arith.constant 0 : index
      %24 = vector.load %arg8[%c0_22, %c0_23] : memref<1x128xf32, #tpu.memory_space<vmem>>, vector<1x128xf32>
      %25 = vector.broadcast %24 : vector<1x128xf32> to vector<128x128xf32>
      %26 = arith.addf %23, %25 : vector<128x128xf32>
      %27 = tpu.iota {dimensions = array<i32: 1>} : vector<128x128xi32>
      %c8_i32 = arith.constant 8 : i32
      %28 = vector.broadcast %c8_i32 : i32 to vector<128x128xi32>
      %29 = arith.cmpi slt, %27, %28 : vector<128x128xi32>
      %cst_24 = arith.constant 0xFF800000 : f32
      %30 = vector.broadcast %cst_24 : f32 to vector<128x128xf32>
      %31 = arith.select %29, %26, %30 : vector<128x128xi1>, vector<128x128xf32>
      %cst_25 = arith.constant dense<0xFF800000> : vector<128xf32>
      %32 = vector.multi_reduction <maximumf>, %31, %cst_25 [1] : vector<128x128xf32> to vector<128xf32>
      %33 = vector.shape_cast %32 : vector<128xf32> to vector<128x1xf32>
      %34 = vector.broadcast %33 : vector<128x1xf32> to vector<128x128xf32>
      %35 = arith.subf %31, %34 : vector<128x128xf32>
      %36 = math.exp %35 : vector<128x128xf32>
      %cst_26 = arith.constant dense<0.000000e+00> : vector<128xf32>
      %37 = vector.multi_reduction <add>, %36, %cst_26 [1] : vector<128x128xf32> to vector<128xf32>
      %38 = vector.shape_cast %37 : vector<128xf32> to vector<128x1xf32>
      %39 = math.log %38 : vector<128x1xf32>
      %40 = vector.broadcast %39 : vector<128x1xf32> to vector<128x128xf32>
      %41 = arith.subf %35, %40 : vector<128x128xf32>
      %c0_27 = arith.constant 0 : index
      %c0_28 = arith.constant 0 : index
      %42 = vector.load %arg9[%c0_27, %c0_28] : memref<128x128xf32, #tpu.memory_space<vmem>>, vector<128x128xf32>
      tpu.vector_store %arg9[%c0_27, %c0_28], %41 {strides = array<i32>} : memref<128x128xf32, #tpu.memory_space<vmem>>, vector<128x128xf32>,
    } else {
    }
    return
  }
  func.func @transform_0(%arg0: i32, %arg1: i32) -> (i32, i32) {
    %c0_i32 = arith.constant 0 : i32
    return %arg0, %arg1 : i32, i32
  }
  func.func @transform_1(%arg0: i32, %arg1: i32) -> (i32, i32) {
    %c0_i32 = arith.constant 0 : i32
    %c0_i32_0 = arith.constant 0 : i32
    return %arg1, %c0_i32 : i32, i32
  }
  func.func @transform_2(%arg0: i32, %arg1: i32) -> (i32, i32) {
    %c0_i32 = arith.constant 0 : i32
    %c0_i32_0 = arith.constant 0 : i32
    return %arg0, %c0_i32 : i32, i32
  }
  func.func @transform_3(%arg0: i32, %arg1: i32) -> (i32, i32) {
    %c0_i32 = arith.constant 0 : i32
    %c0_i32_0 = arith.constant 0 : i32
    return %arg0, %c0_i32 : i32, i32
  }
  func.func @transform_4(%arg0: i32, %arg1: i32) -> (i32, i32) {
    %c0_i32 = arith.constant 0 : i32
    %c0_i32_0 = arith.constant 0 : i32
    %c0_i32_1 = arith.constant 0 : i32
    return %c0_i32, %c0_i32_0 : i32, i32
  }
  func.func @transform_5(%arg0: i32, %arg1: i32) -> (i32, i32) {
    %c0_i32 = arith.constant 0 : i32
    %c0_i32_0 = arith.constant 0 : i32
    %c0_i32_1 = arith.constant 0 : i32
    return %c0_i32, %c0_i32_0 : i32, i32
  }
  func.func @transform_6(%arg0: i32, %arg1: i32) -> (i32, i32) {
    %c0_i32 = arith.constant 0 : i32
    %c0_i32_0 = arith.constant 0 : i32
    %c0_i32_1 = arith.constant 0 : i32
    return %c0_i32, %c0_i32_0 : i32, i32
  }
  func.func @transform_7(%arg0: i32, %arg1: i32) -> (i32, i32) {
    %c0_i32 = arith.constant 0 : i32
    %c0_i32_0 = arith.constant 0 : i32
    return %arg0, %c0_i32 : i32, i32
  }
}

</mosaic_0001>

<llo_original>
// kernel: graphsage_forward.3
$region0: #{graphsage_forward.3}
  #allocation0 [shape = 'u32[]', space=smem, size = 0x4, offset = 0x4, fixed_abs, tag = 'smem constant byte address 0x4 - core index']
  #allocation1 [shape = 'u32[72,128]{1,0:T(1,128)}', space=vmem, size = 0x9000, scoped, tag = 'internal scratch']
  #allocation2 [shape = 'f32[128,128]{1,0:T(8,128)}', space=vmem, size = 0x10000, scoped, tag = 'scratch operand']
  %s0 = inlined_call_operand.vmem [shape: s8[128,128], index: 0, kind: input, shape index: {}]
  %s1 = inlined_call_operand.vmem [shape: bf16[128,128], index: 1, kind: input, shape index: {}, may-alias: {1,2}]
  %s2 = inlined_call_operand.vmem [shape: bf16[128,128], index: 2, kind: input, shape index: {}, may-alias: {1,2}]
  %s3 = inlined_call_operand.vmem [shape: f32[128,1], index: 3, kind: input, shape index: {}]
  %s4 = inlined_call_operand.vmem [shape: bf16[128,128], index: 4, kind: input, shape index: {}]
  %s5 = inlined_call_operand.vmem [shape: bf16[128,128], index: 5, kind: input, shape index: {}]
  %s6 = inlined_call_operand.vmem [shape: f32[1,128], index: 6, kind: input, shape index: {}]
  %s7 = inlined_call_operand.vmem [shape: f32[128,128], index: 7, kind: output, shape index: {}]
  %s8 = sld [smem:[#allocation0]]
  $region46: #{graphsage_forward.3} parent=0
    _
  %s10 = ssub.s32 1, %s8
  %s11 = scalar_select 0, %s10, %s8
  // Predicated region
  $region2: #{graphsage_forward.3} parent=0 // pred_check
    _
  $region3: #{graphsage_forward.3} parent=0 // pred_check_branch
    %13 = sbr.rel (0) target = $region5
  $region4: #{graphsage_forward.3} parent=0 // pred_region
    _
  $region5: #{graphsage_forward.3} parent=0 // pred_fallthru
    _
  // Predicated region
  $region6: #{graphsage_forward.3} parent=0 // pred_check
    _
  $region7: #{graphsage_forward.3} parent=0 // pred_check_branch
    %15 = sbr.rel (0) target = $region9
  $region8: #{graphsage_forward.3} parent=0 // pred_region
    _
  $region9: #{graphsage_forward.3} parent=0 // pred_fallthru
    _
  // Predicated region
  $region10: #{graphsage_forward.3} parent=0 // pred_check
    _
  $region11: #{graphsage_forward.3} parent=0 // pred_check_branch
    %17 = sbr.rel (0) target = $region13
  $region12: #{graphsage_forward.3} parent=0 // pred_region
    _
  $region13: #{graphsage_forward.3} parent=0 // pred_fallthru
    _
  // Predicated region
  $region14: #{graphsage_forward.3} parent=0 // pred_check
    _
  $region15: #{graphsage_forward.3} parent=0 // pred_check_branch
    %19 = sbr.rel (0) target = $region17
  $region16: #{graphsage_forward.3} parent=0 // pred_region
    _
  $region17: #{graphsage_forward.3} parent=0 // pred_fallthru
    _
  // Predicated region
  $region18: #{graphsage_forward.3} parent=0 // pred_check
    _
  $region19: #{graphsage_forward.3} parent=0 // pred_check_branch
    %21 = sbr.rel (0) target = $region21
  $region20: #{graphsage_forward.3} parent=0 // pred_region
    _
  $region21: #{graphsage_forward.3} parent=0 // pred_fallthru
    _
  // Predicated region
  $region22: #{graphsage_forward.3} parent=0 // pred_check
    _
  $region23: #{graphsage_forward.3} parent=0 // pred_check_branch
    %23 = sbr.rel (0) target = $region25
  $region24: #{graphsage_forward.3} parent=0 // pred_region
    _
  $region25: #{graphsage_forward.3} parent=0 // pred_fallthru
    _
  // Predicated region
  $region26: #{graphsage_forward.3} parent=0 // pred_check
    _
  $region27: #{graphsage_forward.3} parent=0 // pred_check_branch
    %25 = sbr.rel (0) target = $region29
  $region28: #{graphsage_forward.3} parent=0 // pred_region
    _
  $region29: #{graphsage_forward.3} parent=0 // pred_fallthru
    _
  %p26 = scmp.eq.s32.totalorder 0, 0
  // Predicated region
  $region30: #{graphsage_forward.3} parent=0 // pred_check
    %p27 = pneg %p26
  $region31: #{graphsage_forward.3} parent=0 // pred_check_branch
    %29 = sbr.rel (%p27) target = $region33
  $region32: #{graphsage_forward.3} parent=0 // pred_region
    %30 = vst [vmem:[#allocation2] sm:$0xff] 0.0
    %31 = vst [vmem:[#allocation2 + $0x8] sm:$0xff] 0.0
    %32 = vst [vmem:[#allocation2 + $0x10] sm:$0xff] 0.0
    %33 = vst [vmem:[#allocation2 + $0x18] sm:$0xff] 0.0
    %34 = vst [vmem:[#allocation2 + $0x20] sm:$0xff] 0.0
    %35 = vst [vmem:[#allocation2 + $0x28] sm:$0xff] 0.0
    %36 = vst [vmem:[#allocation2 + $0x30] sm:$0xff] 0.0
    %37 = vst [vmem:[#allocation2 + $0x38] sm:$0xff] 0.0
    %38 = vst [vmem:[#allocation2 + $0x40] sm:$0xff] 0.0
    %39 = vst [vmem:[#allocation2 + $0x48] sm:$0xff] 0.0
    %40 = vst [vmem:[#allocation2 + $0x50] sm:$0xff] 0.0
    %41 = vst [vmem:[#allocation2 + $0x58] sm:$0xff] 0.0
    %42 = vst [vmem:[#allocation2 + $0x60] sm:$0xff] 0.0
    %43 = vst [vmem:[#allocation2 + $0x68] sm:$0xff] 0.0
    %44 = vst [vmem:[#allocation2 + $0x70] sm:$0xff] 0.0
    %45 = vst [vmem:[#allocation2 + $0x78] sm:$0xff] 0.0
  $region33: #{graphsage_forward.3} parent=0 // pred_fallthru
    _
  %v46 = vld [vmem:[%s0] sm:$0xff]
  %v47 = vld [vmem:[%s0 + $0x8] sm:$0xff]
  %v48 = vld [vmem:[%s0 + $0x10] sm:$0xff]
  %v49 = vld [vmem:[%s0 + $0x18] sm:$0xff]
  %v50 = vunpack.c.0.s8 %v46
  %v51 = vunpack.c.1.s8 %v46
  %v52 = vunpack.c.2.s8 %v46
  %v53 = vunpack.c.3.s8 %v46
  %v54 = vunpack.c.0.s8 %v47
  %v55 = vunpack.c.1.s8 %v47
  %v56 = vunpack.c.2.s8 %v47
  %v57 = vunpack.c.3.s8 %v47
  %v58 = vunpack.c.0.s8 %v48
  %v59 = vunpack.c.1.s8 %v48
  %v60 = vunpack.c.2.s8 %v48
  %v61 = vunpack.c.3.s8 %v48
  %v62 = vunpack.c.0.s8 %v49
  %v63 = vunpack.c.1.s8 %v49
  %v64 = vunpack.c.2.s8 %v49
  %v65 = vunpack.c.3.s8 %v49
  %v66 = vcvt.s32.f32 %v50
  %v67 = vcvt.s32.f32 %v51
  %v68 = vcvt.s32.f32 %v52
  %v69 = vcvt.s32.f32 %v53
  %v70 = vcvt.s32.f32 %v54
  %v71 = vcvt.s32.f32 %v55
  %v72 = vcvt.s32.f32 %v56
  %v73 = vcvt.s32.f32 %v57
  %v74 = vcvt.s32.f32 %v58
  %v75 = vcvt.s32.f32 %v59
  %v76 = vcvt.s32.f32 %v60
  %v77 = vcvt.s32.f32 %v61
  %v78 = vcvt.s32.f32 %v62
  %v79 = vcvt.s32.f32 %v63
  %v80 = vcvt.s32.f32 %v64
  %v81 = vcvt.s32.f32 %v65
  %v82 = vpack.c.bf16 %v67, %v66
  %v83 = vpack.c.bf16 %v69, %v68
  %v84 = vpack.c.bf16 %v71, %v70
  %v85 = vpack.c.bf16 %v73, %v72
  %v86 = vpack.c.bf16 %v75, %v74
  %v87 = vpack.c.bf16 %v77, %v76
  %v88 = vpack.c.bf16 %v79, %v78
  %v89 = vpack.c.bf16 %v81, %v80
  %v90 = vld [vmem:[#allocation2] sm:$0xff]
  %v91 = vld [vmem:[#allocation2 + $0x8] sm:$0xff]
  %v92 = vld [vmem:[#allocation2 + $0x10] sm:$0xff]
  %v93 = vld [vmem:[#allocation2 + $0x18] sm:$0xff]
  %v94 = vld [vmem:[#allocation2 + $0x20] sm:$0xff]
  %v95 = vld [vmem:[#allocation2 + $0x28] sm:$0xff]
  %v96 = vld [vmem:[#allocation2 + $0x30] sm:$0xff]
  %v97 = vld [vmem:[#allocation2 + $0x38] sm:$0xff]
  %v98 = vld [vmem:[#allocation2 + $0x40] sm:$0xff]
  %v99 = vld [vmem:[#allocation2 + $0x48] sm:$0xff]
  %v100 = vld [vmem:[#allocation2 + $0x50] sm:$0xff]
  %v101 = vld [vmem:[#allocation2 + $0x58] sm:$0xff]
  %v102 = vld [vmem:[#allocation2 + $0x60] sm:$0xff]
  %v103 = vld [vmem:[#allocation2 + $0x68] sm:$0xff]
  %v104 = vld [vmem:[#allocation2 + $0x70] sm:$0xff]
  %v105 = vld [vmem:[#allocation2 + $0x78] sm:$0xff]
  %v106 = vld [vmem:[%s1] sm:$0xf]
  %v107 = vld [vmem:[%s1 + $0x4] sm:$0xf]
  %v108 = vld [vmem:[%s1 + $0x8] sm:$0xf]
  %v109 = vld [vmem:[%s1 + $0xc] sm:$0xf]
  %v110 = vld [vmem:[%s1 + $0x10] sm:$0xf]
  %v111 = vld [vmem:[%s1 + $0x14] sm:$0xf]
  %v112 = vld [vmem:[%s1 + $0x18] sm:$0xf]
  %v113 = vld [vmem:[%s1 + $0x1c] sm:$0xf]
  %v114 = vld [vmem:[%s1 + $0x20] sm:$0xf]
  %v115 = vld [vmem:[%s1 + $0x24] sm:$0xf]
  %v116 = vld [vmem:[%s1 + $0x28] sm:$0xf]
  %v117 = vld [vmem:[%s1 + $0x2c] sm:$0xf]
  %v118 = vld [vmem:[%s1 + $0x30] sm:$0xf]
  %v119 = vld [vmem:[%s1 + $0x34] sm:$0xf]
  %v120 = vld [vmem:[%s1 + $0x38] sm:$0xf]
  %v121 = vld [vmem:[%s1 + $0x3c] sm:$0xf]
  %v138 = vunpack.c.l.b16 %v106
  %v139 = vunpack.c.l.b16 %v107
  %v140 = vunpack.c.l.b16 %v108
  %v141 = vunpack.c.l.b16 %v109
  %v142 = vunpack.c.l.b16 %v110
  %v143 = vunpack.c.l.b16 %v111
  %v144 = vunpack.c.l.b16 %v112
  %v145 = vunpack.c.l.b16 %v113
  %v146 = vunpack.c.l.b16 %v114
  %v147 = vunpack.c.l.b16 %v115
  %v148 = vunpack.c.l.b16 %v116
  %v149 = vunpack.c.l.b16 %v117
  %v150 = vunpack.c.l.b16 %v118
  %v151 = vunpack.c.l.b16 %v119
  %v152 = vunpack.c.l.b16 %v120
  %v153 = vunpack.c.l.b16 %v121
  %v154 = vpack.c.b16 %v139, %v138
  %v155 = vpack.c.b16 %v141, %v140
  %v156 = vpack.c.b16 %v143, %v142
  %v157 = vpack.c.b16 %v145, %v144
  %v158 = vpack.c.b16 %v147, %v146
  %v159 = vpack.c.b16 %v149, %v148
  %v160 = vpack.c.b16 %v151, %v150
  %v161 = vpack.c.b16 %v153, %v152
  %170 = vmatpush.bf16.msra.mxu0 %v161
  %171 = vmatpush.bf16.msra.mxu0 %v160
  %172 = vmatpush.bf16.msra.mxu0 %v159
  %173 = vmatpush.bf16.msra.mxu0 %v158
  %174 = vmatpush.bf16.msra.mxu0 %v157
  %175 = vmatpush.bf16.msra.mxu0 %v156
  %176 = vmatpush.bf16.msra.mxu0 %v155
  %177 = vmatpush.bf16.msra.mxu0 %v154
  %178 = vmatmul.bf16.gmra.mxu0 %v82
  %v179 = vpop.f32.mrf.mxu0
  %v180 = vadd.f32 0.0, %v179
  %v181 = vpop.f32.mrf.mxu0
  %v182 = vadd.f32 0.0, %v181
  %183 = vmatmul.bf16.gmra.mxu0 %v83
  %v184 = vpop.f32.mrf.mxu0
  %v185 = vadd.f32 0.0, %v184
  %v186 = vpop.f32.mrf.mxu0
  %v187 = vadd.f32 0.0, %v186
  %188 = vmatmul.bf16.gmra.mxu0 %v84
  %v189 = vpop.f32.mrf.mxu0
  %v190 = vadd.f32 0.0, %v189
  %v191 = vpop.f32.mrf.mxu0
  %v192 = vadd.f32 0.0, %v191
  %193 = vmatmul.bf16.gmra.mxu0 %v85
  %v194 = vpop.f32.mrf.mxu0
  %v195 = vadd.f32 0.0, %v194
  %v196 = vpop.f32.mrf.mxu0
  %v197 = vadd.f32 0.0, %v196
  %198 = vmatmul.bf16.gmra.mxu0 %v86
  %v199 = vpop.f32.mrf.mxu0
  %v200 = vadd.f32 0.0, %v199
  %v201 = vpop.f32.mrf.mxu0
  %v202 = vadd.f32 0.0, %v201
  %203 = vmatmul.bf16.gmra.mxu0 %v87
  %v204 = vpop.f32.mrf.mxu0
  %v205 = vadd.f32 0.0, %v204
  %v206 = vpop.f32.mrf.mxu0
  %v207 = vadd.f32 0.0, %v206
  %208 = vmatmul.bf16.gmra.mxu0 %v88
  %v209 = vpop.f32.mrf.mxu0
  %v210 = vadd.f32 0.0, %v209
  %v211 = vpop.f32.mrf.mxu0
  %v212 = vadd.f32 0.0, %v211
  %213 = vmatmul.bf16.gmra.mxu0 %v89
  %v214 = vpop.f32.mrf.mxu0
  %v215 = vadd.f32 0.0, %v214
  %v216 = vpop.f32.mrf.mxu0
  %v217 = vadd.f32 0.0, %v216
  %218 = vdwg.mxu0
  %v219 = vadd.f32 %v90, %v180
  %v220 = vadd.f32 %v91, %v182
  %v221 = vadd.f32 %v92, %v185
  %v222 = vadd.f32 %v93, %v187
  %v223 = vadd.f32 %v94, %v190
  %v224 = vadd.f32 %v95, %v192
  %v225 = vadd.f32 %v96, %v195
  %v226 = vadd.f32 %v97, %v197
  %v227 = vadd.f32 %v98, %v200
  %v228 = vadd.f32 %v99, %v202
  %v229 = vadd.f32 %v100, %v205
  %v230 = vadd.f32 %v101, %v207
  %v231 = vadd.f32 %v102, %v210
  %v232 = vadd.f32 %v103, %v212
  %v233 = vadd.f32 %v104, %v215
  %v234 = vadd.f32 %v105, %v217
  %235 = vst [vmem:[#allocation2] sm:$0xff] %v219
  %236 = vst [vmem:[#allocation2 + $0x8] sm:$0xff] %v220
  %237 = vst [vmem:[#allocation2 + $0x10] sm:$0xff] %v221
  %238 = vst [vmem:[#allocation2 + $0x18] sm:$0xff] %v222
  %239 = vst [vmem:[#allocation2 + $0x20] sm:$0xff] %v223
  %240 = vst [vmem:[#allocation2 + $0x28] sm:$0xff] %v224
  %241 = vst [vmem:[#allocation2 + $0x30] sm:$0xff] %v225
  %242 = vst [vmem:[#allocation2 + $0x38] sm:$0xff] %v226
  %243 = vst [vmem:[#allocation2 + $0x40] sm:$0xff] %v227
  %244 = vst [vmem:[#allocation2 + $0x48] sm:$0xff] %v228
  %245 = vst [vmem:[#allocation2 + $0x50] sm:$0xff] %v229
  %246 = vst [vmem:[#allocation2 + $0x58] sm:$0xff] %v230
  %247 = vst [vmem:[#allocation2 + $0x60] sm:$0xff] %v231
  %248 = vst [vmem:[#allocation2 + $0x68] sm:$0xff] %v232
  %249 = vst [vmem:[#allocation2 + $0x70] sm:$0xff] %v233
  %250 = vst [vmem:[#allocation2 + $0x78] sm:$0xff] %v234
  // Predicated region
  $region34: #{graphsage_forward.3} parent=0 // pred_check
    %p251 = pneg %p26
  $region35: #{graphsage_forward.3} parent=0 // pred_check_branch
    %253 = sbr.rel (%p251) target = $region37
  $region36: #{graphsage_forward.3} parent=0 // pred_region
    %v254 = vld [vmem:[%s3] sm:$0xff]
    %v255 = vld [vmem:[%s3 + $0x8] sm:$0xff]
    %v256 = vld [vmem:[%s3 + $0x10] sm:$0xff]
    %v257 = vld [vmem:[%s3 + $0x18] sm:$0xff]
    %v258 = vld [vmem:[%s3 + $0x20] sm:$0xff]
    %v259 = vld [vmem:[%s3 + $0x28] sm:$0xff]
    %v260 = vld [vmem:[%s3 + $0x30] sm:$0xff]
    %v261 = vld [vmem:[%s3 + $0x38] sm:$0xff]
    %v262 = vld [vmem:[%s3 + $0x40] sm:$0xff]
    %v263 = vld [vmem:[%s3 + $0x48] sm:$0xff]
    %v264 = vld [vmem:[%s3 + $0x50] sm:$0xff]
    %v265 = vld [vmem:[%s3 + $0x58] sm:$0xff]
    %v266 = vld [vmem:[%s3 + $0x60] sm:$0xff]
    %v267 = vld [vmem:[%s3 + $0x68] sm:$0xff]
    %v268 = vld [vmem:[%s3 + $0x70] sm:$0xff]
    %v269 = vld [vmem:[%s3 + $0x78] sm:$0xff]
    %v270 = vld [vmem:[#allocation2] sm:$0xff]
    %v271 = vld [vmem:[#allocation2 + $0x8] sm:$0xff]
    %v272 = vld [vmem:[#allocation2 + $0x10] sm:$0xff]
    %v273 = vld [vmem:[#allocation2 + $0x18] sm:$0xff]
    %v274 = vld [vmem:[#allocation2 + $0x20] sm:$0xff]
    %v275 = vld [vmem:[#allocation2 + $0x28] sm:$0xff]
    %v276 = vld [vmem:[#allocation2 + $0x30] sm:$0xff]
    %v277 = vld [vmem:[#allocation2 + $0x38] sm:$0xff]
    %v278 = vld [vmem:[#allocation2 + $0x40] sm:$0xff]
    %v279 = vld [vmem:[#allocation2 + $0x48] sm:$0xff]
    %v280 = vld [vmem:[#allocation2 + $0x50] sm:$0xff]
    %v281 = vld [vmem:[#allocation2 + $0x58] sm:$0xff]
    %v282 = vld [vmem:[#allocation2 + $0x60] sm:$0xff]
    %v283 = vld [vmem:[#allocation2 + $0x68] sm:$0xff]
    %v284 = vld [vmem:[#allocation2 + $0x70] sm:$0xff]
    %v285 = vld [vmem:[#allocation2 + $0x78] sm:$0xff]
    %287 = vset.pattern.permute.xlu0 0
    %288 = vperm.xlu0 %287, %v254
    %v289 = vpop.permute.xlu0 %288
    %292 = vset.pattern.permute.xlu0 0
    %293 = vperm.xlu0 %292, %v255
    %v294 = vpop.permute.xlu0 %293
    %297 = vset.pattern.permute.xlu0 0
    %298 = vperm.xlu0 %297, %v256
    %v299 = vpop.permute.xlu0 %298
    %302 = vset.pattern.permute.xlu0 0
    %303 = vperm.xlu0 %302, %v257
    %v304 = vpop.permute.xlu0 %303
    %307 = vset.pattern.permute.xlu0 0
    %308 = vperm.xlu0 %307, %v258
    %v309 = vpop.permute.xlu0 %308
    %312 = vset.pattern.permute.xlu0 0
    %313 = vperm.xlu0 %312, %v259
    %v314 = vpop.permute.xlu0 %313
    %317 = vset.pattern.permute.xlu0 0
    %318 = vperm.xlu0 %317, %v260
    %v319 = vpop.permute.xlu0 %318
    %322 = vset.pattern.permute.xlu0 0
    %323 = vperm.xlu0 %322, %v261
    %v324 = vpop.permute.xlu0 %323
    %327 = vset.pattern.permute.xlu0 0
    %328 = vperm.xlu0 %327, %v262
    %v329 = vpop.permute.xlu0 %328
    %332 = vset.pattern.permute.xlu0 0
    %333 = vperm.xlu0 %332, %v263
    %v334 = vpop.permute.xlu0 %333
    %337 = vset.pattern.permute.xlu0 0
    %338 = vperm.xlu0 %337, %v264
    %v339 = vpop.permute.xlu0 %338
    %342 = vset.pattern.permute.xlu0 0
    %343 = vperm.xlu0 %342, %v265
    %v344 = vpop.permute.xlu0 %343
    %347 = vset.pattern.permute.xlu0 0
    %348 = vperm.xlu0 %347, %v266
    %v349 = vpop.permute.xlu0 %348
    %352 = vset.pattern.permute.xlu0 0
    %353 = vperm.xlu0 %352, %v267
    %v354 = vpop.permute.xlu0 %353
    %357 = vset.pattern.permute.xlu0 0
    %358 = vperm.xlu0 %357, %v268
    %v359 = vpop.permute.xlu0 %358
    %362 = vset.pattern.permute.xlu0 0
    %363 = vperm.xlu0 %362, %v269
    %v364 = vpop.permute.xlu0 %363
    %v366 = vmul.f32 %v289, %v270
    %v367 = vmul.f32 %v294, %v271
    %v368 = vmul.f32 %v299, %v272
    %v369 = vmul.f32 %v304, %v273
    %v370 = vmul.f32 %v309, %v274
    %v371 = vmul.f32 %v314, %v275
    %v372 = vmul.f32 %v319, %v276
    %v373 = vmul.f32 %v324, %v277
    %v374 = vmul.f32 %v329, %v278
    %v375 = vmul.f32 %v334, %v279
    %v376 = vmul.f32 %v339, %v280
    %v377 = vmul.f32 %v344, %v281
    %v378 = vmul.f32 %v349, %v282
    %v379 = vmul.f32 %v354, %v283
    %v380 = vmul.f32 %v359, %v284
    %v381 = vmul.f32 %v364, %v285
    %v382 = vpack.c.bf16 %v367, %v366
    %v383 = vpack.c.bf16 %v369, %v368
    %v384 = vpack.c.bf16 %v371, %v370
    %v385 = vpack.c.bf16 %v373, %v372
    %v386 = vpack.c.bf16 %v375, %v374
    %v387 = vpack.c.bf16 %v377, %v376
    %v388 = vpack.c.bf16 %v379, %v378
    %v389 = vpack.c.bf16 %v381, %v380
    %v390 = vld [vmem:[%s5] sm:$0xf]
    %v391 = vld [vmem:[%s5 + $0x4] sm:$0xf]
    %v392 = vld [vmem:[%s5 + $0x8] sm:$0xf]
    %v393 = vld [vmem:[%s5 + $0xc] sm:$0xf]
    %v394 = vld [vmem:[%s5 + $0x10] sm:$0xf]
    %v395 = vld [vmem:[%s5 + $0x14] sm:$0xf]
    %v396 = vld [vmem:[%s5 + $0x18] sm:$0xf]
    %v397 = vld [vmem:[%s5 + $0x1c] sm:$0xf]
    %v398 = vld [vmem:[%s5 + $0x20] sm:$0xf]
    %v399 = vld [vmem:[%s5 + $0x24] sm:$0xf]
    %v400 = vld [vmem:[%s5 + $0x28] sm:$0xf]
    %v401 = vld [vmem:[%s5 + $0x2c] sm:$0xf]
    %v402 = vld [vmem:[%s5 + $0x30] sm:$0xf]
    %v403 = vld [vmem:[%s5 + $0x34] sm:$0xf]
    %v404 = vld [vmem:[%s5 + $0x38] sm:$0xf]
    %v405 = vld [vmem:[%s5 + $0x3c] sm:$0xf]
    %v422 = vunpack.c.l.b16 %v390
    %v423 = vunpack.c.l.b16 %v391
    %v424 = vunpack.c.l.b16 %v392
    %v425 = vunpack.c.l.b16 %v393
    %v426 = vunpack.c.l.b16 %v394
    %v427 = vunpack.c.l.b16 %v395
    %v428 = vunpack.c.l.b16 %v396
    %v429 = vunpack.c.l.b16 %v397
    %v430 = vunpack.c.l.b16 %v398
    %v431 = vunpack.c.l.b16 %v399
    %v432 = vunpack.c.l.b16 %v400
    %v433 = vunpack.c.l.b16 %v401
    %v434 = vunpack.c.l.b16 %v402
    %v435 = vunpack.c.l.b16 %v403
    %v436 = vunpack.c.l.b16 %v404
    %v437 = vunpack.c.l.b16 %v405
    %v438 = vpack.c.b16 %v423, %v422
    %v439 = vpack.c.b16 %v425, %v424
    %v440 = vpack.c.b16 %v427, %v426
    %v441 = vpack.c.b16 %v429, %v428
    %v442 = vpack.c.b16 %v431, %v430
    %v443 = vpack.c.b16 %v433, %v432
    %v444 = vpack.c.b16 %v435, %v434
    %v445 = vpack.c.b16 %v437, %v436
    %454 = vmatpush.bf16.msra.mxu0 %v445
    %455 = vmatpush.bf16.msra.mxu0 %v444
    %456 = vmatpush.bf16.msra.mxu0 %v443
    %457 = vmatpush.bf16.msra.mxu0 %v442
    %458 = vmatpush.bf16.msra.mxu0 %v441
    %459 = vmatpush.bf16.msra.mxu0 %v440
    %460 = vmatpush.bf16.msra.mxu0 %v439
    %461 = vmatpush.bf16.msra.mxu0 %v438
    %462 = vmatmul.bf16.gmra.mxu0 %v382
    %v463 = vpop.f32.mrf.mxu0
    %v464 = vadd.f32 0.0, %v463
    %v465 = vpop.f32.mrf.mxu0
    %v466 = vadd.f32 0.0, %v465
    %467 = vmatmul.bf16.gmra.mxu0 %v383
    %v468 = vpop.f32.mrf.mxu0
    %v469 = vadd.f32 0.0, %v468
    %v470 = vpop.f32.mrf.mxu0
    %v471 = vadd.f32 0.0, %v470
    %472 = vmatmul.bf16.gmra.mxu0 %v384
    %v473 = vpop.f32.mrf.mxu0
    %v474 = vadd.f32 0.0, %v473
    %v475 = vpop.f32.mrf.mxu0
    %v476 = vadd.f32 0.0, %v475
    %477 = vmatmul.bf16.gmra.mxu0 %v385
    %v478 = vpop.f32.mrf.mxu0
    %v479 = vadd.f32 0.0, %v478
    %v480 = vpop.f32.mrf.mxu0
    %v481 = vadd.f32 0.0, %v480
    %482 = vmatmul.bf16.gmra.mxu0 %v386
    %v483 = vpop.f32.mrf.mxu0
    %v484 = vadd.f32 0.0, %v483
    %v485 = vpop.f32.mrf.mxu0
    %v486 = vadd.f32 0.0, %v485
    %487 = vmatmul.bf16.gmra.mxu0 %v387
    %v488 = vpop.f32.mrf.mxu0
    %v489 = vadd.f32 0.0, %v488
    %v490 = vpop.f32.mrf.mxu0
    %v491 = vadd.f32 0.0, %v490
    %492 = vmatmul.bf16.gmra.mxu0 %v388
    %v493 = vpop.f32.mrf.mxu0
    %v494 = vadd.f32 0.0, %v493
    %v495 = vpop.f32.mrf.mxu0
    %v496 = vadd.f32 0.0, %v495
    %497 = vmatmul.bf16.gmra.mxu0 %v389
    %v498 = vpop.f32.mrf.mxu0
    %v499 = vadd.f32 0.0, %v498
    %v500 = vpop.f32.mrf.mxu0
    %v501 = vadd.f32 0.0, %v500
    %502 = vdwg.mxu0
    %v503 = vld [vmem:[%s2] sm:$0xf]
    %v504 = vld [vmem:[%s2 + $0x4] sm:$0xf]
    %v505 = vld [vmem:[%s2 + $0x8] sm:$0xf]
    %v506 = vld [vmem:[%s2 + $0xc] sm:$0xf]
    %v507 = vld [vmem:[%s2 + $0x10] sm:$0xf]
    %v508 = vld [vmem:[%s2 + $0x14] sm:$0xf]
    %v509 = vld [vmem:[%s2 + $0x18] sm:$0xf]
    %v510 = vld [vmem:[%s2 + $0x1c] sm:$0xf]
    %v511 = vld [vmem:[%s2 + $0x20] sm:$0xf]
    %v512 = vld [vmem:[%s2 + $0x24] sm:$0xf]
    %v513 = vld [vmem:[%s2 + $0x28] sm:$0xf]
    %v514 = vld [vmem:[%s2 + $0x2c] sm:$0xf]
    %v515 = vld [vmem:[%s2 + $0x30] sm:$0xf]
    %v516 = vld [vmem:[%s2 + $0x34] sm:$0xf]
    %v517 = vld [vmem:[%s2 + $0x38] sm:$0xf]
    %v518 = vld [vmem:[%s2 + $0x3c] sm:$0xf]
    %v519 = vld [vmem:[%s4] sm:$0xf]
    %v520 = vld [vmem:[%s4 + $0x4] sm:$0xf]
    %v521 = vld [vmem:[%s4 + $0x8] sm:$0xf]
    %v522 = vld [vmem:[%s4 + $0xc] sm:$0xf]
    %v523 = vld [vmem:[%s4 + $0x10] sm:$0xf]
    %v524 = vld [vmem:[%s4 + $0x14] sm:$0xf]
    %v525 = vld [vmem:[%s4 + $0x18] sm:$0xf]
    %v526 = vld [vmem:[%s4 + $0x1c] sm:$0xf]
    %v527 = vld [vmem:[%s4 + $0x20] sm:$0xf]
    %v528 = vld [vmem:[%s4 + $0x24] sm:$0xf]
    %v529 = vld [vmem:[%s4 + $0x28] sm:$0xf]
    %v530 = vld [vmem:[%s4 + $0x2c] sm:$0xf]
    %v531 = vld [vmem:[%s4 + $0x30] sm:$0xf]
    %v532 = vld [vmem:[%s4 + $0x34] sm:$0xf]
    %v533 = vld [vmem:[%s4 + $0x38] sm:$0xf]
    %v534 = vld [vmem:[%s4 + $0x3c] sm:$0xf]
    %v551 = vunpack.c.l.b16 %v503
    %v552 = vunpack.c.l.b16 %v504
    %v553 = vunpack.c.l.b16 %v505
    %v554 = vunpack.c.l.b16 %v506
    %v555 = vunpack.c.l.b16 %v507
    %v556 = vunpack.c.l.b16 %v508
    %v557 = vunpack.c.l.b16 %v509
    %v558 = vunpack.c.l.b16 %v510
    %v559 = vunpack.c.l.b16 %v511
    %v560 = vunpack.c.l.b16 %v512
    %v561 = vunpack.c.l.b16 %v513
    %v562 = vunpack.c.l.b16 %v514
    %v563 = vunpack.c.l.b16 %v515
    %v564 = vunpack.c.l.b16 %v516
    %v565 = vunpack.c.l.b16 %v517
    %v566 = vunpack.c.l.b16 %v518
    %v567 = vpack.c.b16 %v552, %v551
    %v568 = vpack.c.b16 %v554, %v553
    %v569 = vpack.c.b16 %v556, %v555
    %v570 = vpack.c.b16 %v558, %v557
    %v571 = vpack.c.b16 %v560, %v559
    %v572 = vpack.c.b16 %v562, %v561
    %v573 = vpack.c.b16 %v564, %v563
    %v574 = vpack.c.b16 %v566, %v565
    %v599 = vunpack.c.l.b16 %v519
    %v600 = vunpack.c.l.b16 %v520
    %v601 = vunpack.c.l.b16 %v521
    %v602 = vunpack.c.l.b16 %v522
    %v603 = vunpack.c.l.b16 %v523
    %v604 = vunpack.c.l.b16 %v524
    %v605 = vunpack.c.l.b16 %v525
    %v606 = vunpack.c.l.b16 %v526
    %v607 = vunpack.c.l.b16 %v527
    %v608 = vunpack.c.l.b16 %v528
    %v609 = vunpack.c.l.b16 %v529
    %v610 = vunpack.c.l.b16 %v530
    %v611 = vunpack.c.l.b16 %v531
    %v612 = vunpack.c.l.b16 %v532
    %v613 = vunpack.c.l.b16 %v533
    %v614 = vunpack.c.l.b16 %v534
    %v615 = vpack.c.b16 %v600, %v599
    %v616 = vpack.c.b16 %v602, %v601
    %v617 = vpack.c.b16 %v604, %v603
    %v618 = vpack.c.b16 %v606, %v605
    %v619 = vpack.c.b16 %v608, %v607
    %v620 = vpack.c.b16 %v610, %v609
    %v621 = vpack.c.b16 %v612, %v611
    %v622 = vpack.c.b16 %v614, %v613
    %631 = vmatpush.bf16.msra.mxu0 %v622
    %632 = vmatpush.bf16.msra.mxu0 %v621
    %633 = vmatpush.bf16.msra.mxu0 %v620
    %634 = vmatpush.bf16.msra.mxu0 %v619
    %635 = vmatpush.bf16.msra.mxu0 %v618
    %636 = vmatpush.bf16.msra.mxu0 %v617
    %637 = vmatpush.bf16.msra.mxu0 %v616
    %638 = vmatpush.bf16.msra.mxu0 %v615
    %639 = vmatmul.bf16.gmra.mxu0 %v567
    %v640 = vpop.f32.mrf.mxu0
    %v641 = vadd.f32 %v464, %v640
    %v642 = vpop.f32.mrf.mxu0
    %v643 = vadd.f32 %v466, %v642
    %644 = vmatmul.bf16.gmra.mxu0 %v568
    %v645 = vpop.f32.mrf.mxu0
    %v646 = vadd.f32 %v469, %v645
    %v647 = vpop.f32.mrf.mxu0
    %v648 = vadd.f32 %v471, %v647
    %649 = vmatmul.bf16.gmra.mxu0 %v569
    %v650 = vpop.f32.mrf.mxu0
    %v651 = vadd.f32 %v474, %v650
    %v652 = vpop.f32.mrf.mxu0
    %v653 = vadd.f32 %v476, %v652
    %654 = vmatmul.bf16.gmra.mxu0 %v570
    %v655 = vpop.f32.mrf.mxu0
    %v656 = vadd.f32 %v479, %v655
    %v657 = vpop.f32.mrf.mxu0
    %v658 = vadd.f32 %v481, %v657
    %659 = vmatmul.bf16.gmra.mxu0 %v571
    %v660 = vpop.f32.mrf.mxu0
    %v661 = vadd.f32 %v484, %v660
    %v662 = vpop.f32.mrf.mxu0
    %v663 = vadd.f32 %v486, %v662
    %664 = vmatmul.bf16.gmra.mxu0 %v572
    %v665 = vpop.f32.mrf.mxu0
    %v666 = vadd.f32 %v489, %v665
    %v667 = vpop.f32.mrf.mxu0
    %v668 = vadd.f32 %v491, %v667
    %669 = vmatmul.bf16.gmra.mxu0 %v573
    %v670 = vpop.f32.mrf.mxu0
    %v671 = vadd.f32 %v494, %v670
    %v672 = vpop.f32.mrf.mxu0
    %v673 = vadd.f32 %v496, %v672
    %674 = vmatmul.bf16.gmra.mxu0 %v574
    %v675 = vpop.f32.mrf.mxu0
    %v676 = vadd.f32 %v499, %v675
    %v677 = vpop.f32.mrf.mxu0
    %v678 = vadd.f32 %v501, %v677
    %679 = vdwg.mxu0
    %v680 = vld [vmem:[%s6] sm:$0x1]
    %v682 = vperm.slane %v680, 0
    %v684 = vadd.f32 %v641, %v682
    %v685 = vadd.f32 %v643, %v682
    %v686 = vadd.f32 %v646, %v682
    %v687 = vadd.f32 %v648, %v682
    %v688 = vadd.f32 %v651, %v682
    %v689 = vadd.f32 %v653, %v682
    %v690 = vadd.f32 %v656, %v682
    %v691 = vadd.f32 %v658, %v682
    %v692 = vadd.f32 %v661, %v682
    %v693 = vadd.f32 %v663, %v682
    %v694 = vadd.f32 %v666, %v682
    %v695 = vadd.f32 %v668, %v682
    %v696 = vadd.f32 %v671, %v682
    %v697 = vadd.f32 %v673, %v682
    %v698 = vadd.f32 %v676, %v682
    %v699 = vadd.f32 %v678, %v682
    %v700 = vlaneseq
    %v701 = vand.u32 %v700, 127
    %vm702 = vcmp.lt.s32.totalorder %v701, 8
    %v703 = vsel %vm702, %v684, -inf
    %v704 = vsel %vm702, %v685, -inf
    %v705 = vsel %vm702, %v686, -inf
    %v706 = vsel %vm702, %v687, -inf
    %v707 = vsel %vm702, %v688, -inf
    %v708 = vsel %vm702, %v689, -inf
    %v709 = vsel %vm702, %v690, -inf
    %v710 = vsel %vm702, %v691, -inf
    %v711 = vsel %vm702, %v692, -inf
    %v712 = vsel %vm702, %v693, -inf
    %v713 = vsel %vm702, %v694, -inf
    %v714 = vsel %vm702, %v695, -inf
    %v715 = vsel %vm702, %v696, -inf
    %v716 = vsel %vm702, %v697, -inf
    %v717 = vsel %vm702, %v698, -inf
    %v718 = vsel %vm702, %v699, -inf
    %719 = vmax.xlane.f32.xlu0 %v703
    %v720 = vpop.xlane.xlu0 %719
    %721 = vmax.xlane.f32.xlu0 %v704
    %v722 = vpop.xlane.xlu0 %721
    %723 = vmax.xlane.f32.xlu0 %v705
    %v724 = vpop.xlane.xlu0 %723
    %725 = vmax.xlane.f32.xlu0 %v706
    %v726 = vpop.xlane.xlu0 %725
    %727 = vmax.xlane.f32.xlu0 %v707
    %v728 = vpop.xlane.xlu0 %727
    %729 = vmax.xlane.f32.xlu0 %v708
    %v730 = vpop.xlane.xlu0 %729
    %731 = vmax.xlane.f32.xlu0 %v709
    %v732 = vpop.xlane.xlu0 %731
    %733 = vmax.xlane.f32.xlu0 %v710
    %v734 = vpop.xlane.xlu0 %733
    %735 = vmax.xlane.f32.xlu0 %v711
    %v736 = vpop.xlane.xlu0 %735
    %737 = vmax.xlane.f32.xlu0 %v712
    %v738 = vpop.xlane.xlu0 %737
    %739 = vmax.xlane.f32.xlu0 %v713
    %v740 = vpop.xlane.xlu0 %739
    %741 = vmax.xlane.f32.xlu0 %v714
    %v742 = vpop.xlane.xlu0 %741
    %743 = vmax.xlane.f32.xlu0 %v715
    %v744 = vpop.xlane.xlu0 %743
    %745 = vmax.xlane.f32.xlu0 %v716
    %v746 = vpop.xlane.xlu0 %745
    %747 = vmax.xlane.f32.xlu0 %v717
    %v748 = vpop.xlane.xlu0 %747
    %749 = vmax.xlane.f32.xlu0 %v718
    %v750 = vpop.xlane.xlu0 %749
    %v751 = vsub.f32 %v703, %v720
    %v752 = vsub.f32 %v704, %v722
    %v753 = vsub.f32 %v705, %v724
    %v754 = vsub.f32 %v706, %v726
    %v755 = vsub.f32 %v707, %v728
    %v756 = vsub.f32 %v708, %v730
    %v757 = vsub.f32 %v709, %v732
    %v758 = vsub.f32 %v710, %v734
    %v759 = vsub.f32 %v711, %v736
    %v760 = vsub.f32 %v712, %v738
    %v761 = vsub.f32 %v713, %v740
    %v762 = vsub.f32 %v714, %v742
    %v763 = vsub.f32 %v715, %v744
    %v764 = vsub.f32 %v716, %v746
    %v765 = vsub.f32 %v717, %v748
    %v766 = vsub.f32 %v718, %v750
    %v767 = vmul.f32 %v751, 1.442695
    %v768 = vpow.pop %v767
    %v769 = vmul.f32 %v752, 1.442695
    %v770 = vpow.pop %v769
    %v771 = vmul.f32 %v753, 1.442695
    %v772 = vpow.pop %v771
    %v773 = vmul.f32 %v754, 1.442695
    %v774 = vpow.pop %v773
    %v775 = vmul.f32 %v755, 1.442695
    %v776 = vpow.pop %v775
    %v777 = vmul.f32 %v756, 1.442695
    %v778 = vpow.pop %v777
    %v779 = vmul.f32 %v757, 1.442695
    %v780 = vpow.pop %v779
    %v781 = vmul.f32 %v758, 1.442695
    %v782 = vpow.pop %v781
    %v783 = vmul.f32 %v759, 1.442695
    %v784 = vpow.pop %v783
    %v785 = vmul.f32 %v760, 1.442695
    %v786 = vpow.pop %v785
    %v787 = vmul.f32 %v761, 1.442695
    %v788 = vpow.pop %v787
    %v789 = vmul.f32 %v762, 1.442695
    %v790 = vpow.pop %v789
    %v791 = vmul.f32 %v763, 1.442695
    %v792 = vpow.pop %v791
    %v793 = vmul.f32 %v764, 1.442695
    %v794 = vpow.pop %v793
    %v795 = vmul.f32 %v765, 1.442695
    %v796 = vpow.pop %v795
    %v797 = vmul.f32 %v766, 1.442695
    %v798 = vpow.pop %v797
    %799 = vadd.xlane.f32.xlu0 %v768
    %v800 = vpop.xlane.xlu0 %799
    %801 = vadd.xlane.f32.xlu0 %v770
    %v802 = vpop.xlane.xlu0 %801
    %803 = vadd.xlane.f32.xlu0 %v772
    %v804 = vpop.xlane.xlu0 %803
    %805 = vadd.xlane.f32.xlu0 %v774
    %v806 = vpop.xlane.xlu0 %805
    %807 = vadd.xlane.f32.xlu0 %v776
    %v808 = vpop.xlane.xlu0 %807
    %809 = vadd.xlane.f32.xlu0 %v778
    %v810 = vpop.xlane.xlu0 %809
    %811 = vadd.xlane.f32.xlu0 %v780
    %v812 = vpop.xlane.xlu0 %811
    %813 = vadd.xlane.f32.xlu0 %v782
    %v814 = vpop.xlane.xlu0 %813
    %815 = vadd.xlane.f32.xlu0 %v784
    %v816 = vpop.xlane.xlu0 %815
    %817 = vadd.xlane.f32.xlu0 %v786
    %v818 = vpop.xlane.xlu0 %817
    %819 = vadd.xlane.f32.xlu0 %v788
    %v820 = vpop.xlane.xlu0 %819
    %821 = vadd.xlane.f32.xlu0 %v790
    %v822 = vpop.xlane.xlu0 %821
    %823 = vadd.xlane.f32.xlu0 %v792
    %v824 = vpop.xlane.xlu0 %823
    %825 = vadd.xlane.f32.xlu0 %v794
    %v826 = vpop.xlane.xlu0 %825
    %827 = vadd.xlane.f32.xlu0 %v796
    %v828 = vpop.xlane.xlu0 %827
    %829 = vadd.xlane.f32.xlu0 %v798
    %v830 = vpop.xlane.xlu0 %829
    %v831 = vlog2.pop %v800
    %v832 = vmul.f32 %v831, 0.6931472
    %v833 = vlog2.pop %v802
    %v834 = vmul.f32 %v833, 0.6931472
    %v835 = vlog2.pop %v804
    %v836 = vmul.f32 %v835, 0.6931472
    %v837 = vlog2.pop %v806
    %v838 = vmul.f32 %v837, 0.6931472
    %v839 = vlog2.pop %v808
    %v840 = vmul.f32 %v839, 0.6931472
    %v841 = vlog2.pop %v810
    %v842 = vmul.f32 %v841, 0.6931472
    %v843 = vlog2.pop %v812
    %v844 = vmul.f32 %v843, 0.6931472
    %v845 = vlog2.pop %v814
    %v846 = vmul.f32 %v845, 0.6931472
    %v847 = vlog2.pop %v816
    %v848 = vmul.f32 %v847, 0.6931472
    %v849 = vlog2.pop %v818
    %v850 = vmul.f32 %v849, 0.6931472
    %v851 = vlog2.pop %v820
    %v852 = vmul.f32 %v851, 0.6931472
    %v853 = vlog2.pop %v822
    %v854 = vmul.f32 %v853, 0.6931472
    %v855 = vlog2.pop %v824
    %v856 = vmul.f32 %v855, 0.6931472
    %v857 = vlog2.pop %v826
    %v858 = vmul.f32 %v857, 0.6931472
    %v859 = vlog2.pop %v828
    %v860 = vmul.f32 %v859, 0.6931472
    %v861 = vlog2.pop %v830
    %v862 = vmul.f32 %v861, 0.6931472
    %v863 = vsub.f32 %v751, %v832
    %v864 = vsub.f32 %v752, %v834
    %v865 = vsub.f32 %v753, %v836
    %v866 = vsub.f32 %v754, %v838
    %v867 = vsub.f32 %v755, %v840
    %v868 = vsub.f32 %v756, %v842
    %v869 = vsub.f32 %v757, %v844
    %v870 = vsub.f32 %v758, %v846
    %v871 = vsub.f32 %v759, %v848
    %v872 = vsub.f32 %v760, %v850
    %v873 = vsub.f32 %v761, %v852
    %v874 = vsub.f32 %v762, %v854
    %v875 = vsub.f32 %v763, %v856
    %v876 = vsub.f32 %v764, %v858
    %v877 = vsub.f32 %v765, %v860
    %v878 = vsub.f32 %v766, %v862
    %879 = vst [vmem:[%s7] sm:$0xff] %v863
    %880 = vst [vmem:[%s7 + $0x8] sm:$0xff] %v864
    %881 = vst [vmem:[%s7 + $0x10] sm:$0xff] %v865
    %882 = vst [vmem:[%s7 + $0x18] sm:$0xff] %v866
    %883 = vst [vmem:[%s7 + $0x20] sm:$0xff] %v867
    %884 = vst [vmem:[%s7 + $0x28] sm:$0xff] %v868
    %885 = vst [vmem:[%s7 + $0x30] sm:$0xff] %v869
    %886 = vst [vmem:[%s7 + $0x38] sm:$0xff] %v870
    %887 = vst [vmem:[%s7 + $0x40] sm:$0xff] %v871
    %888 = vst [vmem:[%s7 + $0x48] sm:$0xff] %v872
    %889 = vst [vmem:[%s7 + $0x50] sm:$0xff] %v873
    %890 = vst [vmem:[%s7 + $0x58] sm:$0xff] %v874
    %891 = vst [vmem:[%s7 + $0x60] sm:$0xff] %v875
    %892 = vst [vmem:[%s7 + $0x68] sm:$0xff] %v876
    %893 = vst [vmem:[%s7 + $0x70] sm:$0xff] %v877
    %894 = vst [vmem:[%s7 + $0x78] sm:$0xff] %v878
  $region37: #{graphsage_forward.3} parent=0 // pred_fallthru
    _
  // Predicated region
  $region38: #{graphsage_forward.3} parent=0 // pred_check
    _
  $region39: #{graphsage_forward.3} parent=0 // pred_check_branch
    %896 = sbr.rel (0) target = $region41
  $region40: #{graphsage_forward.3} parent=0 // pred_region
    _
  $region41: #{graphsage_forward.3} parent=0 // pred_fallthru
    _
  // Predicated region
  $region42: #{graphsage_forward.3} parent=0 // pred_check
    _
  $region43: #{graphsage_forward.3} parent=0 // pred_check_branch
    %898 = sbr.rel (0) target = $region45
  $region44: #{graphsage_forward.3} parent=0 // pred_region
    _
  $region45: #{graphsage_forward.3} parent=0 // pred_fallthru
    _

// kernel: graphsage_forward.2
$region0: #{graphsage_forward.2}
  #allocation0 [shape = 'u32[]', space=smem, size = 0x4, offset = 0x4, fixed_abs, tag = 'smem constant byte address 0x4 - core index']
  #allocation1 [shape = 'u32[72,128]{1,0:T(1,128)}', space=vmem, size = 0x9000, scoped, tag = 'internal scratch']
  #allocation2 [shape = 'f32[128,128]{1,0:T(8,128)}', space=vmem, size = 0x10000, scoped, tag = 'scratch operand']
  %s0 = inlined_call_operand.vmem [shape: s8[128,128], index: 0, kind: input, shape index: {}]
  %s1 = inlined_call_operand.vmem [shape: bf16[128,128], index: 1, kind: input, shape index: {}, may-alias: {1,2}]
  %s2 = inlined_call_operand.vmem [shape: bf16[128,128], index: 2, kind: input, shape index: {}, may-alias: {1,2}]
  %s3 = inlined_call_operand.vmem [shape: f32[128,1], index: 3, kind: input, shape index: {}]
  %s4 = inlined_call_operand.vmem [shape: bf16[128,128], index: 4, kind: input, shape index: {}]
  %s5 = inlined_call_operand.vmem [shape: bf16[128,128], index: 5, kind: input, shape index: {}]
  %s6 = inlined_call_operand.vmem [shape: f32[1,128], index: 6, kind: input, shape index: {}]
  %s7 = inlined_call_operand.vmem [shape: bf16[128,128], index: 7, kind: output, shape index: {}]
  %s8 = sld [smem:[#allocation0]]
  $region46: #{graphsage_forward.2} parent=0
    _
  %s10 = ssub.s32 1, %s8
  %s11 = scalar_select 0, %s10, %s8
  // Predicated region
  $region2: #{graphsage_forward.2} parent=0 // pred_check
    _
  $region3: #{graphsage_forward.2} parent=0 // pred_check_branch
    %13 = sbr.rel (0) target = $region5
  $region4: #{graphsage_forward.2} parent=0 // pred_region
    _
  $region5: #{graphsage_forward.2} parent=0 // pred_fallthru
    _
  // Predicated region
  $region6: #{graphsage_forward.2} parent=0 // pred_check
    _
  $region7: #{graphsage_forward.2} parent=0 // pred_check_branch
    %15 = sbr.rel (0) target = $region9
  $region8: #{graphsage_forward.2} parent=0 // pred_region
    _
  $region9: #{graphsage_forward.2} parent=0 // pred_fallthru
    _
  // Predicated region
  $region10: #{graphsage_forward.2} parent=0 // pred_check
    _
  $region11: #{graphsage_forward.2} parent=0 // pred_check_branch
    %17 = sbr.rel (0) target = $region13
  $region12: #{graphsage_forward.2} parent=0 // pred_region
    _
  $region13: #{graphsage_forward.2} parent=0 // pred_fallthru
    _
  // Predicated region
  $region14: #{graphsage_forward.2} parent=0 // pred_check
    _
  $region15: #{graphsage_forward.2} parent=0 // pred_check_branch
    %19 = sbr.rel (0) target = $region17
  $region16: #{graphsage_forward.2} parent=0 // pred_region
    _
  $region17: #{graphsage_forward.2} parent=0 // pred_fallthru
    _
  // Predicated region
  $region18: #{graphsage_forward.2} parent=0 // pred_check
    _
  $region19: #{graphsage_forward.2} parent=0 // pred_check_branch
    %21 = sbr.rel (0) target = $region21
  $region20: #{graphsage_forward.2} parent=0 // pred_region
    _
  $region21: #{graphsage_forward.2} parent=0 // pred_fallthru
    _
  // Predicated region
  $region22: #{graphsage_forward.2} parent=0 // pred_check
    _
  $region23: #{graphsage_forward.2} parent=0 // pred_check_branch
    %23 = sbr.rel (0) target = $region25
  $region24: #{graphsage_forward.2} parent=0 // pred_region
    _
  $region25: #{graphsage_forward.2} parent=0 // pred_fallthru
    _
  // Predicated region
  $region26: #{graphsage_forward.2} parent=0 // pred_check
    _
  $region27: #{graphsage_forward.2} parent=0 // pred_check_branch
    %25 = sbr.rel (0) target = $region29
  $region28: #{graphsage_forward.2} parent=0 // pred_region
    _
  $region29: #{graphsage_forward.2} parent=0 // pred_fallthru
    _
  %p26 = scmp.eq.s32.totalorder 0, 0
  // Predicated region
  $region30: #{graphsage_forward.2} parent=0 // pred_check
    %p27 = pneg %p26
  $region31: #{graphsage_forward.2} parent=0 // pred_check_branch
    %29 = sbr.rel (%p27) target = $region33
  $region32: #{graphsage_forward.2} parent=0 // pred_region
    %30 = vst [vmem:[#allocation2] sm:$0xff] 0.0
    %31 = vst [vmem:[#allocation2 + $0x8] sm:$0xff] 0.0
    %32 = vst [vmem:[#allocation2 + $0x10] sm:$0xff] 0.0
    %33 = vst [vmem:[#allocation2 + $0x18] sm:$0xff] 0.0
    %34 = vst [vmem:[#allocation2 + $0x20] sm:$0xff] 0.0
    %35 = vst [vmem:[#allocation2 + $0x28] sm:$0xff] 0.0
    %36 = vst [vmem:[#allocation2 + $0x30] sm:$0xff] 0.0
    %37 = vst [vmem:[#allocation2 + $0x38] sm:$0xff] 0.0
    %38 = vst [vmem:[#allocation2 + $0x40] sm:$0xff] 0.0
    %39 = vst [vmem:[#allocation2 + $0x48] sm:$0xff] 0.0
    %40 = vst [vmem:[#allocation2 + $0x50] sm:$0xff] 0.0
    %41 = vst [vmem:[#allocation2 + $0x58] sm:$0xff] 0.0
    %42 = vst [vmem:[#allocation2 + $0x60] sm:$0xff] 0.0
    %43 = vst [vmem:[#allocation2 + $0x68] sm:$0xff] 0.0
    %44 = vst [vmem:[#allocation2 + $0x70] sm:$0xff] 0.0
    %45 = vst [vmem:[#allocation2 + $0x78] sm:$0xff] 0.0
  $region33: #{graphsage_forward.2} parent=0 // pred_fallthru
    _
  %v46 = vld [vmem:[%s0] sm:$0xff]
  %v47 = vld [vmem:[%s0 + $0x8] sm:$0xff]
  %v48 = vld [vmem:[%s0 + $0x10] sm:$0xff]
  %v49 = vld [vmem:[%s0 + $0x18] sm:$0xff]
  %v50 = vunpack.c.0.s8 %v46
  %v51 = vunpack.c.1.s8 %v46
  %v52 = vunpack.c.2.s8 %v46
  %v53 = vunpack.c.3.s8 %v46
  %v54 = vunpack.c.0.s8 %v47
  %v55 = vunpack.c.1.s8 %v47
  %v56 = vunpack.c.2.s8 %v47
  %v57 = vunpack.c.3.s8 %v47
  %v58 = vunpack.c.0.s8 %v48
  %v59 = vunpack.c.1.s8 %v48
  %v60 = vunpack.c.2.s8 %v48
  %v61 = vunpack.c.3.s8 %v48
  %v62 = vunpack.c.0.s8 %v49
  %v63 = vunpack.c.1.s8 %v49
  %v64 = vunpack.c.2.s8 %v49
  %v65 = vunpack.c.3.s8 %v49
  %v66 = vcvt.s32.f32 %v50
  %v67 = vcvt.s32.f32 %v51
  %v68 = vcvt.s32.f32 %v52
  %v69 = vcvt.s32.f32 %v53
  %v70 = vcvt.s32.f32 %v54
  %v71 = vcvt.s32.f32 %v55
  %v72 = vcvt.s32.f32 %v56
  %v73 = vcvt.s32.f32 %v57
  %v74 = vcvt.s32.f32 %v58
  %v75 = vcvt.s32.f32 %v59
  %v76 = vcvt.s32.f32 %v60
  %v77 = vcvt.s32.f32 %v61
  %v78 = vcvt.s32.f32 %v62
  %v79 = vcvt.s32.f32 %v63
  %v80 = vcvt.s32.f32 %v64
  %v81 = vcvt.s32.f32 %v65
  %v82 = vpack.c.bf16 %v67, %v66
  %v83 = vpack.c.bf16 %v69, %v68
  %v84 = vpack.c.bf16 %v71, %v70
  %v85 = vpack.c.bf16 %v73, %v72
  %v86 = vpack.c.bf16 %v75, %v74
  %v87 = vpack.c.bf16 %v77, %v76
  %v88 = vpack.c.bf16 %v79, %v78
  %v89 = vpack.c.bf16 %v81, %v80
  %v90 = vld [vmem:[#allocation2] sm:$0xff]
  %v91 = vld [vmem:[#allocation2 + $0x8] sm:$0xff]
  %v92 = vld [vmem:[#allocation2 + $0x10] sm:$0xff]
  %v93 = vld [vmem:[#allocation2 + $0x18] sm:$0xff]
  %v94 = vld [vmem:[#allocation2 + $0x20] sm:$0xff]
  %v95 = vld [vmem:[#allocation2 + $0x28] sm:$0xff]
  %v96 = vld [vmem:[#allocation2 + $0x30] sm:$0xff]
  %v97 = vld [vmem:[#allocation2 + $0x38] sm:$0xff]
  %v98 = vld [vmem:[#allocation2 + $0x40] sm:$0xff]
  %v99 = vld [vmem:[#allocation2 + $0x48] sm:$0xff]
  %v100 = vld [vmem:[#allocation2 + $0x50] sm:$0xff]
  %v101 = vld [vmem:[#allocation2 + $0x58] sm:$0xff]
  %v102 = vld [vmem:[#allocation2 + $0x60] sm:$0xff]
  %v103 = vld [vmem:[#allocation2 + $0x68] sm:$0xff]
  %v104 = vld [vmem:[#allocation2 + $0x70] sm:$0xff]
  %v105 = vld [vmem:[#allocation2 + $0x78] sm:$0xff]
  %v106 = vld [vmem:[%s1] sm:$0xf]
  %v107 = vld [vmem:[%s1 + $0x4] sm:$0xf]
  %v108 = vld [vmem:[%s1 + $0x8] sm:$0xf]
  %v109 = vld [vmem:[%s1 + $0xc] sm:$0xf]
  %v110 = vld [vmem:[%s1 + $0x10] sm:$0xf]
  %v111 = vld [vmem:[%s1 + $0x14] sm:$0xf]
  %v112 = vld [vmem:[%s1 + $0x18] sm:$0xf]
  %v113 = vld [vmem:[%s1 + $0x1c] sm:$0xf]
  %v114 = vld [vmem:[%s1 + $0x20] sm:$0xf]
  %v115 = vld [vmem:[%s1 + $0x24] sm:$0xf]
  %v116 = vld [vmem:[%s1 + $0x28] sm:$0xf]
  %v117 = vld [vmem:[%s1 + $0x2c] sm:$0xf]
  %v118 = vld [vmem:[%s1 + $0x30] sm:$0xf]
  %v119 = vld [vmem:[%s1 + $0x34] sm:$0xf]
  %v120 = vld [vmem:[%s1 + $0x38] sm:$0xf]
  %v121 = vld [vmem:[%s1 + $0x3c] sm:$0xf]
  %v138 = vunpack.c.l.b16 %v106
  %v139 = vunpack.c.l.b16 %v107
  %v140 = vunpack.c.l.b16 %v108
  %v141 = vunpack.c.l.b16 %v109
  %v142 = vunpack.c.l.b16 %v110
  %v143 = vunpack.c.l.b16 %v111
  %v144 = vunpack.c.l.b16 %v112
  %v145 = vunpack.c.l.b16 %v113
  %v146 = vunpack.c.l.b16 %v114
  %v147 = vunpack.c.l.b16 %v115
  %v148 = vunpack.c.l.b16 %v116
  %v149 = vunpack.c.l.b16 %v117
  %v150 = vunpack.c.l.b16 %v118
  %v151 = vunpack.c.l.b16 %v119
  %v152 = vunpack.c.l.b16 %v120
  %v153 = vunpack.c.l.b16 %v121
  %v154 = vpack.c.b16 %v139, %v138
  %v155 = vpack.c.b16 %v141, %v140
  %v156 = vpack.c.b16 %v143, %v142
  %v157 = vpack.c.b16 %v145, %v144
  %v158 = vpack.c.b16 %v147, %v146
  %v159 = vpack.c.b16 %v149, %v148
  %v160 = vpack.c.b16 %v151, %v150
  %v161 = vpack.c.b16 %v153, %v152
  %170 = vmatpush.bf16.msra.mxu0 %v161
  %171 = vmatpush.bf16.msra.mxu0 %v160
  %172 = vmatpush.bf16.msra.mxu0 %v159
  %173 = vmatpush.bf16.msra.mxu0 %v158
  %174 = vmatpush.bf16.msra.mxu0 %v157
  %175 = vmatpush.bf16.msra.mxu0 %v156
  %176 = vmatpush.bf16.msra.mxu0 %v155
  %177 = vmatpush.bf16.msra.mxu0 %v154
  %178 = vmatmul.bf16.gmra.mxu0 %v82
  %v179 = vpop.f32.mrf.mxu0
  %v180 = vadd.f32 0.0, %v179
  %v181 = vpop.f32.mrf.mxu0
  %v182 = vadd.f32 0.0, %v181
  %183 = vmatmul.bf16.gmra.mxu0 %v83
  %v184 = vpop.f32.mrf.mxu0
  %v185 = vadd.f32 0.0, %v184
  %v186 = vpop.f32.mrf.mxu0
  %v187 = vadd.f32 0.0, %v186
  %188 = vmatmul.bf16.gmra.mxu0 %v84
  %v189 = vpop.f32.mrf.mxu0
  %v190 = vadd.f32 0.0, %v189
  %v191 = vpop.f32.mrf.mxu0
  %v192 = vadd.f32 0.0, %v191
  %193 = vmatmul.bf16.gmra.mxu0 %v85
  %v194 = vpop.f32.mrf.mxu0
  %v195 = vadd.f32 0.0, %v194
  %v196 = vpop.f32.mrf.mxu0
  %v197 = vadd.f32 0.0, %v196
  %198 = vmatmul.bf16.gmra.mxu0 %v86
  %v199 = vpop.f32.mrf.mxu0
  %v200 = vadd.f32 0.0, %v199
  %v201 = vpop.f32.mrf.mxu0
  %v202 = vadd.f32 0.0, %v201
  %203 = vmatmul.bf16.gmra.mxu0 %v87
  %v204 = vpop.f32.mrf.mxu0
  %v205 = vadd.f32 0.0, %v204
  %v206 = vpop.f32.mrf.mxu0
  %v207 = vadd.f32 0.0, %v206
  %208 = vmatmul.bf16.gmra.mxu0 %v88
  %v209 = vpop.f32.mrf.mxu0
  %v210 = vadd.f32 0.0, %v209
  %v211 = vpop.f32.mrf.mxu0
  %v212 = vadd.f32 0.0, %v211
  %213 = vmatmul.bf16.gmra.mxu0 %v89
  %v214 = vpop.f32.mrf.mxu0
  %v215 = vadd.f32 0.0, %v214
  %v216 = vpop.f32.mrf.mxu0
  %v217 = vadd.f32 0.0, %v216
  %218 = vdwg.mxu0
  %v219 = vadd.f32 %v90, %v180
  %v220 = vadd.f32 %v91, %v182
  %v221 = vadd.f32 %v92, %v185
  %v222 = vadd.f32 %v93, %v187
  %v223 = vadd.f32 %v94, %v190
  %v224 = vadd.f32 %v95, %v192
  %v225 = vadd.f32 %v96, %v195
  %v226 = vadd.f32 %v97, %v197
  %v227 = vadd.f32 %v98, %v200
  %v228 = vadd.f32 %v99, %v202
  %v229 = vadd.f32 %v100, %v205
  %v230 = vadd.f32 %v101, %v207
  %v231 = vadd.f32 %v102, %v210
  %v232 = vadd.f32 %v103, %v212
  %v233 = vadd.f32 %v104, %v215
  %v234 = vadd.f32 %v105, %v217
  %235 = vst [vmem:[#allocation2] sm:$0xff] %v219
  %236 = vst [vmem:[#allocation2 + $0x8] sm:$0xff] %v220
  %237 = vst [vmem:[#allocation2 + $0x10] sm:$0xff] %v221
  %238 = vst [vmem:[#allocation2 + $0x18] sm:$0xff] %v222
  %239 = vst [vmem:[#allocation2 + $0x20] sm:$0xff] %v223
  %240 = vst [vmem:[#allocation2 + $0x28] sm:$0xff] %v224
  %241 = vst [vmem:[#allocation2 + $0x30] sm:$0xff] %v225
  %242 = vst [vmem:[#allocation2 + $0x38] sm:$0xff] %v226
  %243 = vst [vmem:[#allocation2 + $0x40] sm:$0xff] %v227
  %244 = vst [vmem:[#allocation2 + $0x48] sm:$0xff] %v228
  %245 = vst [vmem:[#allocation2 + $0x50] sm:$0xff] %v229
  %246 = vst [vmem:[#allocation2 + $0x58] sm:$0xff] %v230
  %247 = vst [vmem:[#allocation2 + $0x60] sm:$0xff] %v231
  %248 = vst [vmem:[#allocation2 + $0x68] sm:$0xff] %v232
  %249 = vst [vmem:[#allocation2 + $0x70] sm:$0xff] %v233
  %250 = vst [vmem:[#allocation2 + $0x78] sm:$0xff] %v234
  // Predicated region
  $region34: #{graphsage_forward.2} parent=0 // pred_check
    %p251 = pneg %p26
  $region35: #{graphsage_forward.2} parent=0 // pred_check_branch
    %253 = sbr.rel (%p251) target = $region37
  $region36: #{graphsage_forward.2} parent=0 // pred_region
    %v254 = vld [vmem:[%s3] sm:$0xff]
    %v255 = vld [vmem:[%s3 + $0x8] sm:$0xff]
    %v256 = vld [vmem:[%s3 + $0x10] sm:$0xff]
    %v257 = vld [vmem:[%s3 + $0x18] sm:$0xff]
    %v258 = vld [vmem:[%s3 + $0x20] sm:$0xff]
    %v259 = vld [vmem:[%s3 + $0x28] sm:$0xff]
    %v260 = vld [vmem:[%s3 + $0x30] sm:$0xff]
    %v261 = vld [vmem:[%s3 + $0x38] sm:$0xff]
    %v262 = vld [vmem:[%s3 + $0x40] sm:$0xff]
    %v263 = vld [vmem:[%s3 + $0x48] sm:$0xff]
    %v264 = vld [vmem:[%s3 + $0x50] sm:$0xff]
    %v265 = vld [vmem:[%s3 + $0x58] sm:$0xff]
    %v266 = vld [vmem:[%s3 + $0x60] sm:$0xff]
    %v267 = vld [vmem:[%s3 + $0x68] sm:$0xff]
    %v268 = vld [vmem:[%s3 + $0x70] sm:$0xff]
    %v269 = vld [vmem:[%s3 + $0x78] sm:$0xff]
    %v270 = vld [vmem:[#allocation2] sm:$0xff]
    %v271 = vld [vmem:[#allocation2 + $0x8] sm:$0xff]
    %v272 = vld [vmem:[#allocation2 + $0x10] sm:$0xff]
    %v273 = vld [vmem:[#allocation2 + $0x18] sm:$0xff]
    %v274 = vld [vmem:[#allocation2 + $0x20] sm:$0xff]
    %v275 = vld [vmem:[#allocation2 + $0x28] sm:$0xff]
    %v276 = vld [vmem:[#allocation2 + $0x30] sm:$0xff]
    %v277 = vld [vmem:[#allocation2 + $0x38] sm:$0xff]
    %v278 = vld [vmem:[#allocation2 + $0x40] sm:$0xff]
    %v279 = vld [vmem:[#allocation2 + $0x48] sm:$0xff]
    %v280 = vld [vmem:[#allocation2 + $0x50] sm:$0xff]
    %v281 = vld [vmem:[#allocation2 + $0x58] sm:$0xff]
    %v282 = vld [vmem:[#allocation2 + $0x60] sm:$0xff]
    %v283 = vld [vmem:[#allocation2 + $0x68] sm:$0xff]
    %v284 = vld [vmem:[#allocation2 + $0x70] sm:$0xff]
    %v285 = vld [vmem:[#allocation2 + $0x78] sm:$0xff]
    %287 = vset.pattern.permute.xlu0 0
    %288 = vperm.xlu0 %287, %v254
    %v289 = vpop.permute.xlu0 %288
    %292 = vset.pattern.permute.xlu0 0
    %293 = vperm.xlu0 %292, %v255
    %v294 = vpop.permute.xlu0 %293
    %297 = vset.pattern.permute.xlu0 0
    %298 = vperm.xlu0 %297, %v256
    %v299 = vpop.permute.xlu0 %298
    %302 = vset.pattern.permute.xlu0 0
    %303 = vperm.xlu0 %302, %v257
    %v304 = vpop.permute.xlu0 %303
    %307 = vset.pattern.permute.xlu0 0
    %308 = vperm.xlu0 %307, %v258
    %v309 = vpop.permute.xlu0 %308
    %312 = vset.pattern.permute.xlu0 0
    %313 = vperm.xlu0 %312, %v259
    %v314 = vpop.permute.xlu0 %313
    %317 = vset.pattern.permute.xlu0 0
    %318 = vperm.xlu0 %317, %v260
    %v319 = vpop.permute.xlu0 %318
    %322 = vset.pattern.permute.xlu0 0
    %323 = vperm.xlu0 %322, %v261
    %v324 = vpop.permute.xlu0 %323
    %327 = vset.pattern.permute.xlu0 0
    %328 = vperm.xlu0 %327, %v262
    %v329 = vpop.permute.xlu0 %328
    %332 = vset.pattern.permute.xlu0 0
    %333 = vperm.xlu0 %332, %v263
    %v334 = vpop.permute.xlu0 %333
    %337 = vset.pattern.permute.xlu0 0
    %338 = vperm.xlu0 %337, %v264
    %v339 = vpop.permute.xlu0 %338
    %342 = vset.pattern.permute.xlu0 0
    %343 = vperm.xlu0 %342, %v265
    %v344 = vpop.permute.xlu0 %343
    %347 = vset.pattern.permute.xlu0 0
    %348 = vperm.xlu0 %347, %v266
    %v349 = vpop.permute.xlu0 %348
    %352 = vset.pattern.permute.xlu0 0
    %353 = vperm.xlu0 %352, %v267
    %v354 = vpop.permute.xlu0 %353
    %357 = vset.pattern.permute.xlu0 0
    %358 = vperm.xlu0 %357, %v268
    %v359 = vpop.permute.xlu0 %358
    %362 = vset.pattern.permute.xlu0 0
    %363 = vperm.xlu0 %362, %v269
    %v364 = vpop.permute.xlu0 %363
    %v366 = vmul.f32 %v289, %v270
    %v367 = vmul.f32 %v294, %v271
    %v368 = vmul.f32 %v299, %v272
    %v369 = vmul.f32 %v304, %v273
    %v370 = vmul.f32 %v309, %v274
    %v371 = vmul.f32 %v314, %v275
    %v372 = vmul.f32 %v319, %v276
    %v373 = vmul.f32 %v324, %v277
    %v374 = vmul.f32 %v329, %v278
    %v375 = vmul.f32 %v334, %v279
    %v376 = vmul.f32 %v339, %v280
    %v377 = vmul.f32 %v344, %v281
    %v378 = vmul.f32 %v349, %v282
    %v379 = vmul.f32 %v354, %v283
    %v380 = vmul.f32 %v359, %v284
    %v381 = vmul.f32 %v364, %v285
    %v382 = vpack.c.bf16 %v367, %v366
    %v383 = vpack.c.bf16 %v369, %v368
    %v384 = vpack.c.bf16 %v371, %v370
    %v385 = vpack.c.bf16 %v373, %v372
    %v386 = vpack.c.bf16 %v375, %v374
    %v387 = vpack.c.bf16 %v377, %v376
    %v388 = vpack.c.bf16 %v379, %v378
    %v389 = vpack.c.bf16 %v381, %v380
    %v390 = vld [vmem:[%s5] sm:$0xf]
    %v391 = vld [vmem:[%s5 + $0x4] sm:$0xf]
    %v392 = vld [vmem:[%s5 + $0x8] sm:$0xf]
    %v393 = vld [vmem:[%s5 + $0xc] sm:$0xf]
    %v394 = vld [vmem:[%s5 + $0x10] sm:$0xf]
    %v395 = vld [vmem:[%s5 + $0x14] sm:$0xf]
    %v396 = vld [vmem:[%s5 + $0x18] sm:$0xf]
    %v397 = vld [vmem:[%s5 + $0x1c] sm:$0xf]
    %v398 = vld [vmem:[%s5 + $0x20] sm:$0xf]
    %v399 = vld [vmem:[%s5 + $0x24] sm:$0xf]
    %v400 = vld [vmem:[%s5 + $0x28] sm:$0xf]
    %v401 = vld [vmem:[%s5 + $0x2c] sm:$0xf]
    %v402 = vld [vmem:[%s5 + $0x30] sm:$0xf]
    %v403 = vld [vmem:[%s5 + $0x34] sm:$0xf]
    %v404 = vld [vmem:[%s5 + $0x38] sm:$0xf]
    %v405 = vld [vmem:[%s5 + $0x3c] sm:$0xf]
    %v422 = vunpack.c.l.b16 %v390
    %v423 = vunpack.c.l.b16 %v391
    %v424 = vunpack.c.l.b16 %v392
    %v425 = vunpack.c.l.b16 %v393
    %v426 = vunpack.c.l.b16 %v394
    %v427 = vunpack.c.l.b16 %v395
    %v428 = vunpack.c.l.b16 %v396
    %v429 = vunpack.c.l.b16 %v397
    %v430 = vunpack.c.l.b16 %v398
    %v431 = vunpack.c.l.b16 %v399
    %v432 = vunpack.c.l.b16 %v400
    %v433 = vunpack.c.l.b16 %v401
    %v434 = vunpack.c.l.b16 %v402
    %v435 = vunpack.c.l.b16 %v403
    %v436 = vunpack.c.l.b16 %v404
    %v437 = vunpack.c.l.b16 %v405
    %v438 = vpack.c.b16 %v423, %v422
    %v439 = vpack.c.b16 %v425, %v424
    %v440 = vpack.c.b16 %v427, %v426
    %v441 = vpack.c.b16 %v429, %v428
    %v442 = vpack.c.b16 %v431, %v430
    %v443 = vpack.c.b16 %v433, %v432
    %v444 = vpack.c.b16 %v435, %v434
    %v445 = vpack.c.b16 %v437, %v436
    %454 = vmatpush.bf16.msra.mxu0 %v445
    %455 = vmatpush.bf16.msra.mxu0 %v444
    %456 = vmatpush.bf16.msra.mxu0 %v443
    %457 = vmatpush.bf16.msra.mxu0 %v442
    %458 = vmatpush.bf16.msra.mxu0 %v441
    %459 = vmatpush.bf16.msra.mxu0 %v440
    %460 = vmatpush.bf16.msra.mxu0 %v439
    %461 = vmatpush.bf16.msra.mxu0 %v438
    %462 = vmatmul.bf16.gmra.mxu0 %v382
    %v463 = vpop.f32.mrf.mxu0
    %v464 = vadd.f32 0.0, %v463
    %v465 = vpop.f32.mrf.mxu0
    %v466 = vadd.f32 0.0, %v465
    %467 = vmatmul.bf16.gmra.mxu0 %v383
    %v468 = vpop.f32.mrf.mxu0
    %v469 = vadd.f32 0.0, %v468
    %v470 = vpop.f32.mrf.mxu0
    %v471 = vadd.f32 0.0, %v470
    %472 = vmatmul.bf16.gmra.mxu0 %v384
    %v473 = vpop.f32.mrf.mxu0
    %v474 = vadd.f32 0.0, %v473
    %v475 = vpop.f32.mrf.mxu0
    %v476 = vadd.f32 0.0, %v475
    %477 = vmatmul.bf16.gmra.mxu0 %v385
    %v478 = vpop.f32.mrf.mxu0
    %v479 = vadd.f32 0.0, %v478
    %v480 = vpop.f32.mrf.mxu0
    %v481 = vadd.f32 0.0, %v480
    %482 = vmatmul.bf16.gmra.mxu0 %v386
    %v483 = vpop.f32.mrf.mxu0
    %v484 = vadd.f32 0.0, %v483
    %v485 = vpop.f32.mrf.mxu0
    %v486 = vadd.f32 0.0, %v485
    %487 = vmatmul.bf16.gmra.mxu0 %v387
    %v488 = vpop.f32.mrf.mxu0
    %v489 = vadd.f32 0.0, %v488
    %v490 = vpop.f32.mrf.mxu0
    %v491 = vadd.f32 0.0, %v490
    %492 = vmatmul.bf16.gmra.mxu0 %v388
    %v493 = vpop.f32.mrf.mxu0
    %v494 = vadd.f32 0.0, %v493
    %v495 = vpop.f32.mrf.mxu0
    %v496 = vadd.f32 0.0, %v495
    %497 = vmatmul.bf16.gmra.mxu0 %v389
    %v498 = vpop.f32.mrf.mxu0
    %v499 = vadd.f32 0.0, %v498
    %v500 = vpop.f32.mrf.mxu0
    %v501 = vadd.f32 0.0, %v500
    %502 = vdwg.mxu0
    %v503 = vld [vmem:[%s2] sm:$0xf]
    %v504 = vld [vmem:[%s2 + $0x4] sm:$0xf]
    %v505 = vld [vmem:[%s2 + $0x8] sm:$0xf]
    %v506 = vld [vmem:[%s2 + $0xc] sm:$0xf]
    %v507 = vld [vmem:[%s2 + $0x10] sm:$0xf]
    %v508 = vld [vmem:[%s2 + $0x14] sm:$0xf]
    %v509 = vld [vmem:[%s2 + $0x18] sm:$0xf]
    %v510 = vld [vmem:[%s2 + $0x1c] sm:$0xf]
    %v511 = vld [vmem:[%s2 + $0x20] sm:$0xf]
    %v512 = vld [vmem:[%s2 + $0x24] sm:$0xf]
    %v513 = vld [vmem:[%s2 + $0x28] sm:$0xf]
    %v514 = vld [vmem:[%s2 + $0x2c] sm:$0xf]
    %v515 = vld [vmem:[%s2 + $0x30] sm:$0xf]
    %v516 = vld [vmem:[%s2 + $0x34] sm:$0xf]
    %v517 = vld [vmem:[%s2 + $0x38] sm:$0xf]
    %v518 = vld [vmem:[%s2 + $0x3c] sm:$0xf]
    %v519 = vld [vmem:[%s4] sm:$0xf]
    %v520 = vld [vmem:[%s4 + $0x4] sm:$0xf]
    %v521 = vld [vmem:[%s4 + $0x8] sm:$0xf]
    %v522 = vld [vmem:[%s4 + $0xc] sm:$0xf]
    %v523 = vld [vmem:[%s4 + $0x10] sm:$0xf]
    %v524 = vld [vmem:[%s4 + $0x14] sm:$0xf]
    %v525 = vld [vmem:[%s4 + $0x18] sm:$0xf]
    %v526 = vld [vmem:[%s4 + $0x1c] sm:$0xf]
    %v527 = vld [vmem:[%s4 + $0x20] sm:$0xf]
    %v528 = vld [vmem:[%s4 + $0x24] sm:$0xf]
    %v529 = vld [vmem:[%s4 + $0x28] sm:$0xf]
    %v530 = vld [vmem:[%s4 + $0x2c] sm:$0xf]
    %v531 = vld [vmem:[%s4 + $0x30] sm:$0xf]
    %v532 = vld [vmem:[%s4 + $0x34] sm:$0xf]
    %v533 = vld [vmem:[%s4 + $0x38] sm:$0xf]
    %v534 = vld [vmem:[%s4 + $0x3c] sm:$0xf]
    %v551 = vunpack.c.l.b16 %v503
    %v552 = vunpack.c.l.b16 %v504
    %v553 = vunpack.c.l.b16 %v505
    %v554 = vunpack.c.l.b16 %v506
    %v555 = vunpack.c.l.b16 %v507
    %v556 = vunpack.c.l.b16 %v508
    %v557 = vunpack.c.l.b16 %v509
    %v558 = vunpack.c.l.b16 %v510
    %v559 = vunpack.c.l.b16 %v511
    %v560 = vunpack.c.l.b16 %v512
    %v561 = vunpack.c.l.b16 %v513
    %v562 = vunpack.c.l.b16 %v514
    %v563 = vunpack.c.l.b16 %v515
    %v564 = vunpack.c.l.b16 %v516
    %v565 = vunpack.c.l.b16 %v517
    %v566 = vunpack.c.l.b16 %v518
    %v567 = vpack.c.b16 %v552, %v551
    %v568 = vpack.c.b16 %v554, %v553
    %v569 = vpack.c.b16 %v556, %v555
    %v570 = vpack.c.b16 %v558, %v557
    %v571 = vpack.c.b16 %v560, %v559
    %v572 = vpack.c.b16 %v562, %v561
    %v573 = vpack.c.b16 %v564, %v563
    %v574 = vpack.c.b16 %v566, %v565
    %v599 = vunpack.c.l.b16 %v519
    %v600 = vunpack.c.l.b16 %v520
    %v601 = vunpack.c.l.b16 %v521
    %v602 = vunpack.c.l.b16 %v522
    %v603 = vunpack.c.l.b16 %v523
    %v604 = vunpack.c.l.b16 %v524
    %v605 = vunpack.c.l.b16 %v525
    %v606 = vunpack.c.l.b16 %v526
    %v607 = vunpack.c.l.b16 %v527
    %v608 = vunpack.c.l.b16 %v528
    %v609 = vunpack.c.l.b16 %v529
    %v610 = vunpack.c.l.b16 %v530
    %v611 = vunpack.c.l.b16 %v531
    %v612 = vunpack.c.l.b16 %v532
    %v613 = vunpack.c.l.b16 %v533
    %v614 = vunpack.c.l.b16 %v534
    %v615 = vpack.c.b16 %v600, %v599
    %v616 = vpack.c.b16 %v602, %v601
    %v617 = vpack.c.b16 %v604, %v603
    %v618 = vpack.c.b16 %v606, %v605
    %v619 = vpack.c.b16 %v608, %v607
    %v620 = vpack.c.b16 %v610, %v609
    %v621 = vpack.c.b16 %v612, %v611
    %v622 = vpack.c.b16 %v614, %v613
    %631 = vmatpush.bf16.msra.mxu0 %v622
    %632 = vmatpush.bf16.msra.mxu0 %v621
    %633 = vmatpush.bf16.msra.mxu0 %v620
    %634 = vmatpush.bf16.msra.mxu0 %v619
    %635 = vmatpush.bf16.msra.mxu0 %v618
    %636 = vmatpush.bf16.msra.mxu0 %v617
    %637 = vmatpush.bf16.msra.mxu0 %v616
    %638 = vmatpush.bf16.msra.mxu0 %v615
    %639 = vmatmul.bf16.gmra.mxu0 %v567
    %v640 = vpop.f32.mrf.mxu0
    %v641 = vadd.f32 %v464, %v640
    %v642 = vpop.f32.mrf.mxu0
    %v643 = vadd.f32 %v466, %v642
    %644 = vmatmul.bf16.gmra.mxu0 %v568
    %v645 = vpop.f32.mrf.mxu0
    %v646 = vadd.f32 %v469, %v645
    %v647 = vpop.f32.mrf.mxu0
    %v648 = vadd.f32 %v471, %v647
    %649 = vmatmul.bf16.gmra.mxu0 %v569
    %v650 = vpop.f32.mrf.mxu0
    %v651 = vadd.f32 %v474, %v650
    %v652 = vpop.f32.mrf.mxu0
    %v653 = vadd.f32 %v476, %v652
    %654 = vmatmul.bf16.gmra.mxu0 %v570
    %v655 = vpop.f32.mrf.mxu0
    %v656 = vadd.f32 %v479, %v655
    %v657 = vpop.f32.mrf.mxu0
    %v658 = vadd.f32 %v481, %v657
    %659 = vmatmul.bf16.gmra.mxu0 %v571
    %v660 = vpop.f32.mrf.mxu0
    %v661 = vadd.f32 %v484, %v660
    %v662 = vpop.f32.mrf.mxu0
    %v663 = vadd.f32 %v486, %v662
    %664 = vmatmul.bf16.gmra.mxu0 %v572
    %v665 = vpop.f32.mrf.mxu0
    %v666 = vadd.f32 %v489, %v665
    %v667 = vpop.f32.mrf.mxu0
    %v668 = vadd.f32 %v491, %v667
    %669 = vmatmul.bf16.gmra.mxu0 %v573
    %v670 = vpop.f32.mrf.mxu0
    %v671 = vadd.f32 %v494, %v670
    %v672 = vpop.f32.mrf.mxu0
    %v673 = vadd.f32 %v496, %v672
    %674 = vmatmul.bf16.gmra.mxu0 %v574
    %v675 = vpop.f32.mrf.mxu0
    %v676 = vadd.f32 %v499, %v675
    %v677 = vpop.f32.mrf.mxu0
    %v678 = vadd.f32 %v501, %v677
    %679 = vdwg.mxu0
    %v680 = vld [vmem:[%s6] sm:$0x1]
    %v682 = vperm.slane %v680, 0
    %v684 = vadd.f32 %v641, %v682
    %v685 = vadd.f32 %v643, %v682
    %v686 = vadd.f32 %v646, %v682
    %v687 = vadd.f32 %v648, %v682
    %v688 = vadd.f32 %v651, %v682
    %v689 = vadd.f32 %v653, %v682
    %v690 = vadd.f32 %v656, %v682
    %v691 = vadd.f32 %v658, %v682
    %v692 = vadd.f32 %v661, %v682
    %v693 = vadd.f32 %v663, %v682
    %v694 = vadd.f32 %v666, %v682
    %v695 = vadd.f32 %v668, %v682
    %v696 = vadd.f32 %v671, %v682
    %v697 = vadd.f32 %v673, %v682
    %v698 = vadd.f32 %v676, %v682
    %v699 = vadd.f32 %v678, %v682
    %v700 = vmax.f32 %v684, 0.0
    %v701 = vmax.f32 %v685, 0.0
    %v702 = vmax.f32 %v686, 0.0
    %v703 = vmax.f32 %v687, 0.0
    %v704 = vmax.f32 %v688, 0.0
    %v705 = vmax.f32 %v689, 0.0
    %v706 = vmax.f32 %v690, 0.0
    %v707 = vmax.f32 %v691, 0.0
    %v708 = vmax.f32 %v692, 0.0
    %v709 = vmax.f32 %v693, 0.0
    %v710 = vmax.f32 %v694, 0.0
    %v711 = vmax.f32 %v695, 0.0
    %v712 = vmax.f32 %v696, 0.0
    %v713 = vmax.f32 %v697, 0.0
    %v714 = vmax.f32 %v698, 0.0
    %v715 = vmax.f32 %v699, 0.0
    %v716 = vpack.c.bf16 %v700, %v700
    %v717 = vpack.c.bf16 %v701, %v701
    %v718 = vpack.c.bf16 %v702, %v702
    %v719 = vpack.c.bf16 %v703, %v703
    %v720 = vpack.c.bf16 %v704, %v704
    %v721 = vpack.c.bf16 %v705, %v705
    %v722 = vpack.c.bf16 %v706, %v706
    %v723 = vpack.c.bf16 %v707, %v707
    %v724 = vpack.c.bf16 %v708, %v708
    %v725 = vpack.c.bf16 %v709, %v709
    %v726 = vpack.c.bf16 %v710, %v710
    %v727 = vpack.c.bf16 %v711, %v711
    %v728 = vpack.c.bf16 %v712, %v712
    %v729 = vpack.c.bf16 %v713, %v713
    %v730 = vpack.c.bf16 %v714, %v714
    %v731 = vpack.c.bf16 %v715, %v715
    %732 = vst [vmem:[%s7] sm:$0xf] %v716
    %733 = vst [vmem:[%s7 + $0x4] sm:$0xf] %v717
    %734 = vst [vmem:[%s7 + $0x8] sm:$0xf] %v718
    %735 = vst [vmem:[%s7 + $0xc] sm:$0xf] %v719
    %736 = vst [vmem:[%s7 + $0x10] sm:$0xf] %v720
    %737 = vst [vmem:[%s7 + $0x14] sm:$0xf] %v721
    %738 = vst [vmem:[%s7 + $0x18] sm:$0xf] %v722
    %739 = vst [vmem:[%s7 + $0x1c] sm:$0xf] %v723
    %740 = vst [vmem:[%s7 + $0x20] sm:$0xf] %v724
    %741 = vst [vmem:[%s7 + $0x24] sm:$0xf] %v725
    %742 = vst [vmem:[%s7 + $0x28] sm:$0xf] %v726
    %743 = vst [vmem:[%s7 + $0x2c] sm:$0xf] %v727
    %744 = vst [vmem:[%s7 + $0x30] sm:$0xf] %v728
    %745 = vst [vmem:[%s7 + $0x34] sm:$0xf] %v729
    %746 = vst [vmem:[%s7 + $0x38] sm:$0xf] %v730
    %747 = vst [vmem:[%s7 + $0x3c] sm:$0xf] %v731
  $region37: #{graphsage_forward.2} parent=0 // pred_fallthru
    _
  // Predicated region
  $region38: #{graphsage_forward.2} parent=0 // pred_check
    _
  $region39: #{graphsage_forward.2} parent=0 // pred_check_branch
    %749 = sbr.rel (0) target = $region41
  $region40: #{graphsage_forward.2} parent=0 // pred_region
    _
  $region41: #{graphsage_forward.2} parent=0 // pred_fallthru
    _
  // Predicated region
  $region42: #{graphsage_forward.2} parent=0 // pred_check
    _
  $region43: #{graphsage_forward.2} parent=0 // pred_check_branch
    %751 = sbr.rel (0) target = $region45
  $region44: #{graphsage_forward.2} parent=0 // pred_region
    _
  $region45: #{graphsage_forward.2} parent=0 // pred_fallthru
    _

</llo_original>
